<compile_context>
chip_gen: v5e
topology: v5e:2x2
jax: 0.10.0
libtpu: 0.0.40
codegen_flags: <defaults>
</compile_context>

<pallas_src>
import functools

import jax
import jax.numpy as jnp
import numpy as np
from jax.experimental import pallas as pl
from jax.experimental.pallas import tpu as pltpu

EPS = 1e-8
LAMBDA_SOFTMAX = 20.0


# ----------------------------------------------------------------------------
# Pallas kernel
# ----------------------------------------------------------------------------
def _col_to_row(col):
    """(N, 1) sublane-major column -> (1, N) lane-major row (select + reduce)."""
    n = col.shape[0]
    r = jax.lax.broadcasted_iota(jnp.int32, (n, n), 0)
    c = jax.lax.broadcasted_iota(jnp.int32, (n, n), 1)
    m = jnp.where(r == c, jnp.broadcast_to(col, (n, n)), 0.0)
    return jnp.sum(m, axis=0, keepdims=True)


def _fused_sim_kernel(im_ref, s_ref, imask_ref, cmask_ref, out_ref, *, lam):
    """One (image i, caption block) step: fused i2t + t2i similarity row.

    im_ref   : (1, Lc, D)    image-region features of image i
    s_ref    : (TQ, Lw, D)   caption-word features of TQ captions
    imask_ref: (1, 1, Lc)    additive image mask (lane-major)
    cmask_ref: (TQ, Lw, 1)   additive caption mask (sublane-major)
    out_ref  : (1, 1, TQ)    scores row: i2t[i, j] + t2i[j, i]
    """
    tq, lw, d = s_ref.shape
    lc = im_ref.shape[1]
    rows = tq * lw

    im2 = im_ref[0].astype(jnp.float32)               # (Lc, D)
    s3 = s_ref[...].astype(jnp.float32)               # (TQ, Lw, D)
    imask = imask_ref[...].astype(jnp.float32)        # (1, 1, Lc)
    cmask = cmask_ref[...].astype(jnp.float32)        # (TQ, Lw, 1)

    # --- feature l2-normalisation: once per block, not per pair -------------
    im_nrm_col = jnp.sqrt(jnp.sum(im2 * im2, axis=-1, keepdims=True))     # (Lc, 1)
    imn = im2 / (im_nrm_col + EPS)                                        # (Lc, D)
    im_nrm_row = _col_to_row(im_nrm_col)[None]                            # (1, 1, Lc)

    s_nrm = jnp.sqrt(jnp.sum(s3 * s3, axis=-1, keepdims=True))            # (TQ, Lw, 1)
    sn3 = s3 / (s_nrm + EPS)                                              # (TQ, Lw, D)
    sn2 = sn3.reshape(rows, d)                                            # (TQ*Lw, D)

    # --- shared attention logits: ONE (TQ*Lw, D) x (D, Lc) MXU matmul -------
    a0 = jnp.einsum('rd,ld->rl', sn2, imn,
                    preferred_element_type=jnp.float32)                   # (TQ*Lw, Lc)
    a0_3 = a0.reshape(tq, lw, lc)                                         # (TQ, Lw, Lc)
    a3 = jnp.where(a0_3 > 0, a0_3, 0.1 * a0_3)                            # LeakyReLU(0.1)

    # ============== pass 1: i2t (context = image, query = captions) =========
    n1 = jnp.sqrt(jnp.sum(a3 * a3, axis=1, keepdims=True))                # l2norm over words
    z1 = (a3 / (n1 + EPS) + cmask + imask) * lam
    z1 = z1 - jnp.max(z1, axis=2, keepdims=True)
    e1 = jnp.exp(z1)
    p1 = e1 / jnp.sum(e1, axis=2, keepdims=True)                          # softmax over regions
    # focal_type='prob': re_attn = p / sum(p) is an exact no-op -> dropped.

    wc1 = jnp.dot(p1.reshape(rows, lc), imn,
                  preferred_element_type=jnp.float32).reshape(tq, lw, d)  # weighted context
    w12 = jnp.sum(s3 * wc1, axis=-1, keepdims=True)                       # (TQ, Lw, 1)
    w2 = jnp.sqrt(jnp.sum(wc1 * wc1, axis=-1, keepdims=True))
    cos1 = w12 / jnp.maximum(s_nrm * w2, EPS)
    i2t = jnp.sum(cos1, axis=1, keepdims=True) / lw                       # (TQ, 1, 1)

    # ============== pass 2: t2i (context = captions, query = image) =========
    n2 = jnp.sqrt(jnp.sum(a3 * a3, axis=2, keepdims=True))                # l2norm over regions
    z2 = (a3 / (n2 + EPS) + cmask + imask) * lam
    z2 = z2 - jnp.max(z2, axis=1, keepdims=True)
    e2 = jnp.exp(z2)
    p2 = e2 / jnp.sum(e2, axis=1, keepdims=True)                          # softmax over words

    # cos(im[l], wc2[j, l]) without materialising / transposing wc2:
    #   im[l] . wc2[j, l] = (|im_l| + eps) * sum_w p2 * a0
    #   |wc2[j, l]|^2     = sum_{w, w'} p2_w p2_w' (sn_w . sn_w')   (per-pair Gram)
    num2 = (im_nrm_row + EPS) * jnp.sum(p2 * a0_3, axis=1, keepdims=True)  # (TQ, 1, Lc)
    gram = jnp.einsum('jwd,jvd->jwv', sn3, sn3,
                      preferred_element_type=jnp.float32)                  # (TQ, Lw, Lw)
    gp = jnp.einsum('jwv,jvl->jwl', gram, p2,
                    preferred_element_type=jnp.float32)                    # (TQ, Lw, Lc)
    wc2_nrm = jnp.sqrt(jnp.sum(p2 * gp, axis=1, keepdims=True))            # (TQ, 1, Lc)
    cos2 = num2 / jnp.maximum(im_nrm_row * wc2_nrm, EPS)
    t2i = jnp.sum(cos2, axis=2, keepdims=True) / lc                        # (TQ, 1, 1)

    # --- lane-dense score row for this (image, caption-block) ---------------
    out_ref[...] = _col_to_row((i2t + t2i).reshape(tq, 1))[None]           # (1, 1, TQ)


# ----------------------------------------------------------------------------
# Wrappers
# ----------------------------------------------------------------------------
def xattn_scores(im, s, im_m, s_m, lam=LAMBDA_SOFTMAX, tq=None):
    """Fused similarity matrix: scores[i, j] = t2i[j, i] + i2t[i, j]."""
    bi, lc, d = im.shape
    bj, lw, _ = s.shape
    if tq is None:
        tq = bj
    assert bj % tq == 0, "caption batch must be divisible by the query tile"
    assert tq == bj or tq % 128 == 0, "partial caption tiles must be lane-aligned"

    out = pl.pallas_call(
        functools.partial(_fused_sim_kernel, lam=lam),
        out_shape=jax.ShapeDtypeStruct((bi, 1, bj), jnp.float32),
        grid=(bi, bj // tq),
        in_specs=[
            pl.BlockSpec((1, lc, d), lambda i, j: (i, 0, 0)),   # image i
            pl.BlockSpec((tq, lw, d), lambda i, j: (j, 0, 0)),  # caption block
            pl.BlockSpec((1, 1, lc), lambda i, j: (i, 0, 0)),   # image mask (lane-major)
            pl.BlockSpec((tq, lw, 1), lambda i, j: (j, 0, 0)),  # caption mask
        ],
        out_specs=pl.BlockSpec((1, 1, tq), lambda i, j: (i, 0, j)),
        compiler_params=pltpu.CompilerParams(
            dimension_semantics=("parallel", "parallel"),
            vmem_limit_bytes=32 * 1024 * 1024),
    )(im, s, im_m[:, None, :], s_m[..., None])
    return out.reshape(bi, bj)


def rwa_loss(im, s, im_m, s_l, s_m, lambda_softmax=LAMBDA_SOFTMAX):
    """Forward pass of RWALoss (focal_type='prob')."""
    del s_l  # caption lengths are unused in the reference forward pass
    scores = xattn_scores(im, s, im_m, s_m, lambda_softmax)
    # Final softmax-KL contrastive loss in plain jnp (tiny (B, B) matrix).
    z = scores * lambda_softmax
    pred = jax.nn.softmax(z, axis=1)
    labels = jnp.eye(scores.shape[0], dtype=scores.dtype)
    loss_mat = pred * (jax.nn.log_softmax(z, axis=1) - jnp.log(labels + 1e-6))
    return jnp.mean(jnp.sum(loss_mat, axis=1))


# ----------------------------------------------------------------------------
# Pure-JAX reference (direct port of the PyTorch code) for validation
# ----------------------------------------------------------------------------
def _l2norm_ref(x, axis):
    return x / (jnp.sqrt(jnp.sum(x * x, axis=axis, keepdims=True)) + EPS)


def _func_attention_ref(query, context, query_mask, context_mask, lam):
    q = _l2norm_ref(query, -1)
    c = _l2norm_ref(context, -1)
    attn = jnp.einsum('cld,qwd->cqlw', c, q)
    attn = jnp.where(attn > 0, attn, 0.1 * attn)
    attn = _l2norm_ref(attn, 3)
    attn = jnp.transpose(attn, (0, 1, 3, 2))
    attn = attn + query_mask[None] + context_mask[:, None]
    attn = jax.nn.softmax(attn * lam, axis=-1)
    re_attn = attn / jnp.sum(attn, axis=-1, keepdims=True)
    return jnp.einsum('cqwl,cld->cqwd', re_attn, c)


def _cos_ref(x1, x2):
    w12 = jnp.sum(x1 * x2, -1)
    w1 = jnp.sqrt(jnp.sum(x1 * x1, -1))
    w2 = jnp.sqrt(jnp.sum(x2 * x2, -1))
    return w12 / jnp.maximum(w1 * w2, EPS)


def rwa_ref(im, s, im_m, s_m, lam):
    wc = _func_attention_ref(s, im, s_m[..., None], im_m[:, None, :], lam)
    i2t = _cos_ref(s[None], wc).mean(-1)
    wc2 = _func_attention_ref(im, s, im_m[..., None], s_m[:, None, :], lam)
    t2i = _cos_ref(im[None], wc2).mean(-1)
    scores = t2i.T + i2t
    z = scores * lam
    pred = jax.nn.softmax(z, axis=1)
    labels = jnp.eye(scores.shape[0], dtype=scores.dtype)
    loss_mat = pred * (jax.nn.log_softmax(z, axis=1) - jnp.log(labels + 1e-6))
    return scores, jnp.mean(jnp.sum(loss_mat, axis=1))


# ----------------------------------------------------------------------------
if __name__ == "__main__":
    key = jax.random.PRNGKey(0)
    B, R, W, D = 4, 8, 8, 32          # n_image = n_caption = B, regions, words, dim
    k1, k2 = jax.random.split(key)
    im = jax.random.normal(k1, (B, R, D), dtype=jnp.float32)
    s = jax.random.normal(k2, (B, W, D), dtype=jnp.float32)

    # additive masks: 0 for valid positions, -1e4 for padded positions
    im_m = (jnp.where(jnp.arange(R)[None, :] >= R - 2, -1e4, 0.0)
            * jnp.ones((B, 1))).astype(jnp.float32)
    s_m = (jnp.where(jnp.arange(W)[None, :] >= W - 2, -1e4, 0.0)
           * jnp.ones((B, 1))).astype(jnp.float32)
    s_l = jnp.full((B,), W - 2, dtype=jnp.int32)   # unused (as in reference forward)

    scores = jax.block_until_ready(xattn_scores(im, s, im_m, s_m, LAMBDA_SOFTMAX))
    loss = jax.block_until_ready(rwa_loss(im, s, im_m, s_l, s_m))

    scores_ref, loss_ref = rwa_ref(im, s, im_m, s_m, LAMBDA_SOFTMAX)
    np.testing.assert_allclose(np.asarray(scores), np.asarray(scores_ref),
                               rtol=1e-4, atol=1e-4)
    # loss tolerance is looser: lambda_softmax=20 amplifies ~1e-6 score noise
    np.testing.assert_allclose(np.asarray(loss), np.asarray(loss_ref),
                               rtol=1e-3, atol=1e-3)
    print("KERNEL_OK")
</pallas_src>

<mosaic_0001>
module attributes {stable_mosaic.version = 11 : i64} {
  func.func @_fused_sim_kernel(%arg0: i32, %arg1: i32, %arg2: memref<1x8x32xf32, #tpu.memory_space<vmem>>, %arg3: memref<4x8x32xf32, #tpu.memory_space<vmem>>, %arg4: memref<1x1x8xf32, #tpu.memory_space<vmem>>, %arg5: memref<4x8x1xf32, #tpu.memory_space<vmem>>, %arg6: memref<1x1x4xf32, #tpu.memory_space<vmem>>) attributes {dimension_semantics = [#tpu.dimension_semantics<parallel>, #tpu.dimension_semantics<parallel>], iteration_bounds = array<i64: 4, 1>, scalar_prefetch = 0 : i64, scratch_operands = 0 : i64, tpu.core_type = #tpu.core_type<tc>, window_params = [{transform_indices = @transform_0, window_bounds = array<i64: 1, 8, 32>}, {transform_indices = @transform_1, window_bounds = array<i64: 4, 8, 32>}, {transform_indices = @transform_2, window_bounds = array<i64: 1, 1, 8>}, {transform_indices = @transform_3, window_bounds = array<i64: 4, 8, 1>}, {transform_indices = @transform_4, window_bounds = array<i64: 1, 1, 4>}]} {
    %c0 = arith.constant 0 : index
    %c0_0 = arith.constant 0 : index
    %c0_1 = arith.constant 0 : index
    %0 = vector.load %arg2[%c0, %c0_0, %c0_1] : memref<1x8x32xf32, #tpu.memory_space<vmem>>, vector<1x8x32xf32>
    %1 = vector.shape_cast %0 : vector<1x8x32xf32> to vector<8x32xf32>
    %c0_2 = arith.constant 0 : index
    %c0_3 = arith.constant 0 : index
    %c0_4 = arith.constant 0 : index
    %2 = vector.load %arg3[%c0_2, %c0_3, %c0_4] : memref<4x8x32xf32, #tpu.memory_space<vmem>>, vector<4x8x32xf32>
    %c0_5 = arith.constant 0 : index
    %c0_6 = arith.constant 0 : index
    %c0_7 = arith.constant 0 : index
    %3 = vector.load %arg4[%c0_5, %c0_6, %c0_7] : memref<1x1x8xf32, #tpu.memory_space<vmem>>, vector<1x1x8xf32>
    %c0_8 = arith.constant 0 : index
    %c0_9 = arith.constant 0 : index
    %c0_10 = arith.constant 0 : index
    %4 = vector.load %arg5[%c0_8, %c0_9, %c0_10] : memref<4x8x1xf32, #tpu.memory_space<vmem>>, vector<4x8x1xf32>
    %5 = arith.mulf %1, %1 : vector<8x32xf32>
    %cst = arith.constant dense<0.000000e+00> : vector<8xf32>
    %6 = vector.multi_reduction <add>, %5, %cst [1] : vector<8x32xf32> to vector<8xf32>
    %7 = vector.shape_cast %6 : vector<8xf32> to vector<8x1xf32>
    %8 = math.sqrt %7 : vector<8x1xf32>
    %cst_11 = arith.constant 9.99999993E-9 : f32
    %9 = vector.broadcast %cst_11 : f32 to vector<8x1xf32>
    %10 = arith.addf %8, %9 : vector<8x1xf32>
    %11 = vector.broadcast %10 : vector<8x1xf32> to vector<8x32xf32>
    %12 = arith.divf %1, %11 : vector<8x32xf32>
    %13 = tpu.iota {dimensions = array<i32: 0>} : vector<8x8xi32>
    %14 = tpu.iota {dimensions = array<i32: 1>} : vector<8x8xi32>
    %15 = arith.cmpi eq, %13, %14 : vector<8x8xi32>
    %16 = vector.shape_cast %8 : vector<8x1xf32> to vector<8x1xf32>
    %17 = vector.broadcast %16 : vector<8x1xf32> to vector<8x8xf32>
    %cst_12 = arith.constant 0.000000e+00 : f32
    %18 = vector.broadcast %cst_12 : f32 to vector<8x8xf32>
    %19 = arith.select %15, %17, %18 : vector<8x8xi1>, vector<8x8xf32>
    %cst_13 = arith.constant dense<0.000000e+00> : vector<8xf32>
    %20 = vector.multi_reduction <add>, %19, %cst_13 [0] : vector<8x8xf32> to vector<8xf32>
    %21 = vector.shape_cast %20 : vector<8xf32> to vector<1x8xf32>
    %22 = vector.shape_cast %21 : vector<1x8xf32> to vector<1x1x8xf32>
    %23 = arith.mulf %2, %2 : vector<4x8x32xf32>
    %cst_14 = arith.constant dense<0.000000e+00> : vector<4x8xf32>
    %24 = vector.multi_reduction <add>, %23, %cst_14 [2] : vector<4x8x32xf32> to vector<4x8xf32>
    %25 = vector.shape_cast %24 : vector<4x8xf32> to vector<4x8x1xf32>
    %26 = math.sqrt %25 : vector<4x8x1xf32>
    %cst_15 = arith.constant 9.99999993E-9 : f32
    %27 = vector.broadcast %cst_15 : f32 to vector<4x8x1xf32>
    %28 = arith.addf %26, %27 : vector<4x8x1xf32>
    %29 = vector.broadcast %28 : vector<4x8x1xf32> to vector<4x8x32xf32>
    %30 = arith.divf %2, %29 : vector<4x8x32xf32>
    %31 = vector.shape_cast %30 : vector<4x8x32xf32> to vector<32x32xf32>
    "tpu.trace_start"() <{level = 10 : i32, message = "rd,ld->rl"}> : () -> ()
    %cst_16 = arith.constant dense<0.000000e+00> : vector<32x8xf32>
    %32 = tpu.matmul %31, %12, %cst_16 {dimension_numbers = #tpu.dot_dimension_numbers<[1], [1], [0], [0], [0, 0, 1, 0], [], []>} : vector<32x32xf32>, vector<8x32xf32>, vector<32x8xf32> -> vector<32x8xf32>
    "tpu.trace_stop"() : () -> ()
    %33 = vector.shape_cast %32 : vector<32x8xf32> to vector<4x8x8xf32>
    %cst_17 = arith.constant 0.000000e+00 : f32
    %34 = vector.broadcast %cst_17 : f32 to vector<4x8x8xf32>
    %35 = arith.cmpf ogt, %33, %34 : vector<4x8x8xf32>
    %cst_18 = arith.constant 1.000000e-01 : f32
    %36 = vector.broadcast %cst_18 : f32 to vector<4x8x8xf32>
    %37 = arith.mulf %36, %33 : vector<4x8x8xf32>
    %38 = arith.select %35, %33, %37 : vector<4x8x8xi1>, vector<4x8x8xf32>
    %39 = arith.mulf %38, %38 : vector<4x8x8xf32>
    %cst_19 = arith.constant dense<0.000000e+00> : vector<4x8xf32>
    %40 = vector.multi_reduction <add>, %39, %cst_19 [1] : vector<4x8x8xf32> to vector<4x8xf32>
    %41 = vector.shape_cast %40 : vector<4x8xf32> to vector<4x1x8xf32>
    %42 = math.sqrt %41 : vector<4x1x8xf32>
    %cst_20 = arith.constant 9.99999993E-9 : f32
    %43 = vector.broadcast %cst_20 : f32 to vector<4x1x8xf32>
    %44 = arith.addf %42, %43 : vector<4x1x8xf32>
    %45 = vector.broadcast %44 : vector<4x1x8xf32> to vector<4x8x8xf32>
    %46 = arith.divf %38, %45 : vector<4x8x8xf32>
    %47 = vector.broadcast %4 : vector<4x8x1xf32> to vector<4x8x8xf32>
    %48 = arith.addf %46, %47 : vector<4x8x8xf32>
    %49 = vector.broadcast %3 : vector<1x1x8xf32> to vector<4x8x8xf32>
    %50 = arith.addf %48, %49 : vector<4x8x8xf32>
    %cst_21 = arith.constant 2.000000e+01 : f32
    %51 = vector.broadcast %cst_21 : f32 to vector<4x8x8xf32>
    %52 = arith.mulf %50, %51 : vector<4x8x8xf32>
    %cst_22 = arith.constant dense<0xFF800000> : vector<4x8xf32>
    %53 = vector.multi_reduction <maximumf>, %52, %cst_22 [2] : vector<4x8x8xf32> to vector<4x8xf32>
    %54 = vector.shape_cast %53 : vector<4x8xf32> to vector<4x8x1xf32>
    %55 = vector.broadcast %54 : vector<4x8x1xf32> to vector<4x8x8xf32>
    %56 = arith.subf %52, %55 : vector<4x8x8xf32>
    %57 = math.exp %56 : vector<4x8x8xf32>
    %cst_23 = arith.constant dense<0.000000e+00> : vector<4x8xf32>
    %58 = vector.multi_reduction <add>, %57, %cst_23 [2] : vector<4x8x8xf32> to vector<4x8xf32>
    %59 = vector.shape_cast %58 : vector<4x8xf32> to vector<4x8x1xf32>
    %60 = vector.broadcast %59 : vector<4x8x1xf32> to vector<4x8x8xf32>
    %61 = arith.divf %57, %60 : vector<4x8x8xf32>
    %62 = vector.shape_cast %61 : vector<4x8x8xf32> to vector<32x8xf32>
    %cst_24 = arith.constant dense<0.000000e+00> : vector<32x32xf32>
    %63 = tpu.matmul %62, %12, %cst_24 {dimension_numbers = #tpu.dot_dimension_numbers<[1], [0], [0], [1], [0, 0, 1, 1], [], []>} : vector<32x8xf32>, vector<8x32xf32>, vector<32x32xf32> -> vector<32x32xf32>
    %64 = vector.shape_cast %63 : vector<32x32xf32> to vector<4x8x32xf32>
    %65 = arith.mulf %2, %64 : vector<4x8x32xf32>
    %cst_25 = arith.constant dense<0.000000e+00> : vector<4x8xf32>
    %66 = vector.multi_reduction <add>, %65, %cst_25 [2] : vector<4x8x32xf32> to vector<4x8xf32>
    %67 = vector.shape_cast %66 : vector<4x8xf32> to vector<4x8x1xf32>
    %68 = arith.mulf %64, %64 : vector<4x8x32xf32>
    %cst_26 = arith.constant dense<0.000000e+00> : vector<4x8xf32>
    %69 = vector.multi_reduction <add>, %68, %cst_26 [2] : vector<4x8x32xf32> to vector<4x8xf32>
    %70 = vector.shape_cast %69 : vector<4x8xf32> to vector<4x8x1xf32>
    %71 = math.sqrt %70 : vector<4x8x1xf32>
    %72 = arith.mulf %26, %71 : vector<4x8x1xf32>
    %cst_27 = arith.constant 9.99999993E-9 : f32
    %73 = vector.broadcast %cst_27 : f32 to vector<4x8x1xf32>
    %74 = arith.maximumf %72, %73 : vector<4x8x1xf32>
    %75 = arith.divf %67, %74 : vector<4x8x1xf32>
    %cst_28 = arith.constant dense<0.000000e+00> : vector<4x1xf32>
    %76 = vector.multi_reduction <add>, %75, %cst_28 [1] : vector<4x8x1xf32> to vector<4x1xf32>
    %77 = vector.shape_cast %76 : vector<4x1xf32> to vector<4x1x1xf32>
    %cst_29 = arith.constant 8.000000e+00 : f32
    %78 = vector.broadcast %cst_29 : f32 to vector<4x1x1xf32>
    %79 = arith.divf %77, %78 : vector<4x1x1xf32>
    %80 = arith.mulf %38, %38 : vector<4x8x8xf32>
    %cst_30 = arith.constant dense<0.000000e+00> : vector<4x8xf32>
    %81 = vector.multi_reduction <add>, %80, %cst_30 [2] : vector<4x8x8xf32> to vector<4x8xf32>
    %82 = vector.shape_cast %81 : vector<4x8xf32> to vector<4x8x1xf32>
    %83 = math.sqrt %82 : vector<4x8x1xf32>
    %cst_31 = arith.constant 9.99999993E-9 : f32
    %84 = vector.broadcast %cst_31 : f32 to vector<4x8x1xf32>
    %85 = arith.addf %83, %84 : vector<4x8x1xf32>
    %86 = vector.broadcast %85 : vector<4x8x1xf32> to vector<4x8x8xf32>
    %87 = arith.divf %38, %86 : vector<4x8x8xf32>
    %88 = vector.broadcast %4 : vector<4x8x1xf32> to vector<4x8x8xf32>
    %89 = arith.addf %87, %88 : vector<4x8x8xf32>
    %90 = vector.broadcast %3 : vector<1x1x8xf32> to vector<4x8x8xf32>
    %91 = arith.addf %89, %90 : vector<4x8x8xf32>
    %cst_32 = arith.constant 2.000000e+01 : f32
    %92 = vector.broadcast %cst_32 : f32 to vector<4x8x8xf32>
    %93 = arith.mulf %91, %92 : vector<4x8x8xf32>
    %cst_33 = arith.constant dense<0xFF800000> : vector<4x8xf32>
    %94 = vector.multi_reduction <maximumf>, %93, %cst_33 [1] : vector<4x8x8xf32> to vector<4x8xf32>
    %95 = vector.shape_cast %94 : vector<4x8xf32> to vector<4x1x8xf32>
    %96 = vector.broadcast %95 : vector<4x1x8xf32> to vector<4x8x8xf32>
    %97 = arith.subf %93, %96 : vector<4x8x8xf32>
    %98 = math.exp %97 : vector<4x8x8xf32>
    %cst_34 = arith.constant dense<0.000000e+00> : vector<4x8xf32>
    %99 = vector.multi_reduction <add>, %98, %cst_34 [1] : vector<4x8x8xf32> to vector<4x8xf32>
    %100 = vector.shape_cast %99 : vector<4x8xf32> to vector<4x1x8xf32>
    %101 = vector.broadcast %100 : vector<4x1x8xf32> to vector<4x8x8xf32>
    %102 = arith.divf %98, %101 : vector<4x8x8xf32>
    %cst_35 = arith.constant 9.99999993E-9 : f32
    %103 = vector.broadcast %cst_35 : f32 to vector<1x1x8xf32>
    %104 = arith.addf %22, %103 : vector<1x1x8xf32>
    %105 = arith.mulf %102, %33 : vector<4x8x8xf32>
    %cst_36 = arith.constant dense<0.000000e+00> : vector<4x8xf32>
    %106 = vector.multi_reduction <add>, %105, %cst_36 [1] : vector<4x8x8xf32> to vector<4x8xf32>
    %107 = vector.shape_cast %106 : vector<4x8xf32> to vector<4x1x8xf32>
    %108 = vector.broadcast %104 : vector<1x1x8xf32> to vector<4x1x8xf32>
    %109 = arith.mulf %108, %107 : vector<4x1x8xf32>
    "tpu.trace_start"() <{level = 10 : i32, message = "jwd,jvd->jwv"}> : () -> ()
    %cst_37 = arith.constant dense<0.000000e+00> : vector<4x8x8xf32>
    %110 = tpu.matmul %30, %30, %cst_37 {dimension_numbers = #tpu.dot_dimension_numbers<[2], [2], [1], [1], [0, 0, 0, 1, 1, 1], [0], [0]>} : vector<4x8x32xf32>, vector<4x8x32xf32>, vector<4x8x8xf32> -> vector<4x8x8xf32>
    "tpu.trace_stop"() : () -> ()
    "tpu.trace_start"() <{level = 10 : i32, message = "jwv,jvl->jwl"}> : () -> ()
    %cst_38 = arith.constant dense<0.000000e+00> : vector<4x8x8xf32>
    %111 = tpu.matmul %110, %102, %cst_38 {dimension_numbers = #tpu.dot_dimension_numbers<[2], [1], [1], [2], [0, 0, 0, 1, 1, 2], [0], [0]>} : vector<4x8x8xf32>, vector<4x8x8xf32>, vector<4x8x8xf32> -> vector<4x8x8xf32>
    "tpu.trace_stop"() : () -> ()
    %112 = arith.mulf %102, %111 : vector<4x8x8xf32>
    %cst_39 = arith.constant dense<0.000000e+00> : vector<4x8xf32>
    %113 = vector.multi_reduction <add>, %112, %cst_39 [1] : vector<4x8x8xf32> to vector<4x8xf32>
    %114 = vector.shape_cast %113 : vector<4x8xf32> to vector<4x1x8xf32>
    %115 = math.sqrt %114 : vector<4x1x8xf32>
    %116 = vector.broadcast %22 : vector<1x1x8xf32> to vector<4x1x8xf32>
    %117 = arith.mulf %116, %115 : vector<4x1x8xf32>
    %cst_40 = arith.constant 9.99999993E-9 : f32
    %118 = vector.broadcast %cst_40 : f32 to vector<4x1x8xf32>
    %119 = arith.maximumf %117, %118 : vector<4x1x8xf32>
    %120 = arith.divf %109, %119 : vector<4x1x8xf32>
    %cst_41 = arith.constant dense<0.000000e+00> : vector<4x1xf32>
    %121 = vector.multi_reduction <add>, %120, %cst_41 [2] : vector<4x1x8xf32> to vector<4x1xf32>
    %122 = vector.shape_cast %121 : vector<4x1xf32> to vector<4x1x1xf32>
    %cst_42 = arith.constant 8.000000e+00 : f32
    %123 = vector.broadcast %cst_42 : f32 to vector<4x1x1xf32>
    %124 = arith.divf %122, %123 : vector<4x1x1xf32>
    %125 = arith.addf %79, %124 : vector<4x1x1xf32>
    %126 = vector.shape_cast %125 : vector<4x1x1xf32> to vector<4x1xf32>
    %127 = tpu.iota {dimensions = array<i32: 0>} : vector<4x4xi32>
    %128 = tpu.iota {dimensions = array<i32: 1>} : vector<4x4xi32>
    %129 = arith.cmpi eq, %127, %128 : vector<4x4xi32>
    %130 = vector.shape_cast %126 : vector<4x1xf32> to vector<4x1xf32>
    %131 = vector.broadcast %130 : vector<4x1xf32> to vector<4x4xf32>
    %cst_43 = arith.constant 0.000000e+00 : f32
    %132 = vector.broadcast %cst_43 : f32 to vector<4x4xf32>
    %133 = arith.select %129, %131, %132 : vector<4x4xi1>, vector<4x4xf32>
    %cst_44 = arith.constant dense<0.000000e+00> : vector<4xf32>
    %134 = vector.multi_reduction <add>, %133, %cst_44 [0] : vector<4x4xf32> to vector<4xf32>
    %135 = vector.shape_cast %134 : vector<4xf32> to vector<1x4xf32>
    %136 = vector.shape_cast %135 : vector<1x4xf32> to vector<1x1x4xf32>
    %c0_45 = arith.constant 0 : index
    %c0_46 = arith.constant 0 : index
    %c0_47 = arith.constant 0 : index
    %137 = vector.load %arg6[%c0_45, %c0_46, %c0_47] : memref<1x1x4xf32, #tpu.memory_space<vmem>>, vector<1x1x4xf32>
    tpu.vector_store %arg6[%c0_45, %c0_46, %c0_47], %136 {strides = array<i32>} : memref<1x1x4xf32, #tpu.memory_space<vmem>>, vector<1x1x4xf32>,
    return
  }
  func.func @transform_0(%arg0: i32, %arg1: i32) -> (i32, i32, i32) {
    %c0_i32 = arith.constant 0 : i32
    %c0_i32_0 = arith.constant 0 : i32
    %c0_i32_1 = arith.constant 0 : i32
    return %arg0, %c0_i32, %c0_i32_0 : i32, i32, i32
  }
  func.func @transform_1(%arg0: i32, %arg1: i32) -> (i32, i32, i32) {
    %c0_i32 = arith.constant 0 : i32
    %c0_i32_0 = arith.constant 0 : i32
    %c0_i32_1 = arith.constant 0 : i32
    return %arg1, %c0_i32, %c0_i32_0 : i32, i32, i32
  }
  func.func @transform_2(%arg0: i32, %arg1: i32) -> (i32, i32, i32) {
    %c0_i32 = arith.constant 0 : i32
    %c0_i32_0 = arith.constant 0 : i32
    %c0_i32_1 = arith.constant 0 : i32
    return %arg0, %c0_i32, %c0_i32_0 : i32, i32, i32
  }
  func.func @transform_3(%arg0: i32, %arg1: i32) -> (i32, i32, i32) {
    %c0_i32 = arith.constant 0 : i32
    %c0_i32_0 = arith.constant 0 : i32
    %c0_i32_1 = arith.constant 0 : i32
    return %arg1, %c0_i32, %c0_i32_0 : i32, i32, i32
  }
  func.func @transform_4(%arg0: i32, %arg1: i32) -> (i32, i32, i32) {
    %c0_i32 = arith.constant 0 : i32
    %c0_i32_0 = arith.constant 0 : i32
    return %arg0, %c0_i32, %arg1 : i32, i32, i32
  }
}

</mosaic_0001>

<llo_original>
// kernel: tpu_custom_call.1
$region0: #{tpu_custom_call.1}
  #allocation0 [shape = 'u32[]', space=smem, size = 0x4, offset = 0x4, fixed_abs, tag = 'smem constant byte address 0x4 - core index']
  #allocation1 [shape = 'u32[72,128]{1,0:T(1,128)}', space=vmem, size = 0x9000, scoped, tag = 'internal scratch']
  %s0 = inlined_call_operand.vmem [shape: f32[4,8,32], index: 0, kind: input, shape index: {}]
  %s1 = inlined_call_operand.hbm [shape: f32[4,8,32], index: 1, kind: input, shape index: {}]
  %s2 = inlined_call_operand.vmem [shape: f32[4,1,8], index: 2, kind: input, shape index: {}]
  %s3 = inlined_call_operand.vmem [shape: f32[4,8,1], index: 3, kind: input, shape index: {}]
  %s4 = inlined_call_operand.hbm [shape: f32[4,1,4], index: 4, kind: output, shape index: {}]
  %s5 = sld [smem:[#allocation0]]
  $region53: #{tpu_custom_call.1} parent=0
    _
  %s7 = ssub.s32 1, %s5
  %s8 = scalar_select 0, %s7, %s5
  $region1: #{tpu_custom_call.1} parent=0
    #allocation2 [shape = 'u8[16384]{0}', space=vmem, size = 0x4000, scoped, tag = 'input window, operand 1, single buffered']
    #allocation3 [shape = 's32[2]{0}', space=sflag, size = 0x8, scoped, tag = 'scoped memory for tpu_custom_call.1']
    #allocation4 [shape = 's32[2]{0}', space=sflag, size = 0x8, scoped, tag = 'scoped memory for tpu_custom_call.1']
    #allocation5 [shape = 'u8[1024]{0}', space=vmem, size = 0x400, scoped, tag = 'output window, operand 0']
    %9 = vsyncpa [#allocation3], 0
    %10 = vsyncpa [#allocation4], 0
    %s11 = scalar_lea.sflag [#allocation4], 1
    %12 = vsyncpa %s11, 0
    loop: start=0, step=1, limit=6
    $region2: #{tpu_custom_call.1} parent=1 // loop_pre_header
      _
    $region3: #{tpu_custom_call.1} parent=1 // loop_header
      %s14 = sphi 0, %s18
      %p15 = scmp.ge.s32.totalorder %s14, 6
      %s21 = sphi 0, %s33
      %s22 = sphi 0, %s29
      %s23 = sphi 0, %s21
      %s24 = sphi 0, %s22
      %s25 = sphi 0, %s23
      %s26 = sphi 0, %s24
      %s36 = sphi 0, %s38
      %s39 = sphi 0, %s36
      %s40 = sphi 0, %s39
      %s56 = sphi 0, %s40
      %s62 = sphi 0, %s64
      %s65 = sphi 0, %s62
      %s66 = sphi 0, %s65
      %s82 = sphi 0, %s66
      %s88 = sphi 0, %s90
      %s91 = sphi 0, %s88
      %s92 = sphi 0, %s91
      %s108 = sphi 0, %s92
      %s114 = sphi 0, %s116
      %s117 = sphi 0, %s114
      %s118 = sphi 0, %s117
      %s134 = sphi 0, %s118
      %s142 = sphi 0, %s144
      %s145 = sphi 0, %s142
      %s146 = sphi 0, %s145
      %s162 = sphi 0, %s146
    $region4: #{tpu_custom_call.1} parent=1 // loop_header_branch
      %17 = sbr.rel (%p15) target = $region8
    $region5: #{tpu_custom_call.1} parent=1 // loop_body
      %s19 = ssub.s32 %s14, 1
      %s20 = ssub.s32 %s14, 2
      %s27 = sadd.s32 1, %s22
      %p28 = scmp.ge.s32.totalorder %s27, 1
      %s29 = scalar_select %p28, 0, %s27
      %s30 = sadd.s32 1, %s21
      %s31 = scalar_select %p28, %s30, %s21
      %p32 = scmp.ge.s32.totalorder %s31, 4
      %s33 = scalar_select %p32, 0, %s31
      %s34 = ssub.s32 %s21, %s33
      %p35 = scmp.eq.s32.totalorder %s34, 0
      %s37 = sadd.s32 %s36, 1
      %s38 = scalar_select %p35, %s36, %s37
      %p41 = pneg %p35
      %p42 = scmp.eq.s32.totalorder %s14, 3
      %p43 = por %p41, %p42
      %p44 = scmp.ne.s32.totalorder %s36, %s39
      %p45 = scmp.eq.s32.totalorder %s14, 0
      %p46 = por %p44, %p45
      %p47 = scmp.ne.s32.totalorder %s36, %s39
      %p48 = scmp.eq.s32.totalorder %s19, 3
      %p49 = por %p47, %p48
      %p50 = scmp.ne.s32.totalorder %s39, %s40
      %p51 = scmp.eq.s32.totalorder %s19, 0
      %p52 = por %p50, %p51
      %p53 = scmp.ne.s32.totalorder %s39, %s40
      %p54 = scmp.eq.s32.totalorder %s20, 3
      %p55 = por %p53, %p54
      %p57 = scmp.ne.s32.totalorder %s40, %s56
      %p58 = scmp.eq.s32.totalorder %s20, 0
      %p59 = por %p57, %p58
      %s60 = ssub.s32 %s22, %s29
      %p61 = scmp.eq.s32.totalorder %s60, 0
      %s63 = sadd.s32 %s62, 1
      %s64 = scalar_select %p61, %s62, %s63
      %p67 = pneg %p61
      %p68 = scmp.eq.s32.totalorder %s14, 3
      %p69 = por %p67, %p68
      %p70 = scmp.ne.s32.totalorder %s62, %s65
      %p71 = scmp.eq.s32.totalorder %s14, 0
      %p72 = por %p70, %p71
      %p73 = scmp.ne.s32.totalorder %s62, %s65
      %p74 = scmp.eq.s32.totalorder %s19, 3
      %p75 = por %p73, %p74
      %p76 = scmp.ne.s32.totalorder %s65, %s66
      %p77 = scmp.eq.s32.totalorder %s19, 0
      %p78 = por %p76, %p77
      %p79 = scmp.ne.s32.totalorder %s65, %s66
      %p80 = scmp.eq.s32.totalorder %s20, 3
      %p81 = por %p79, %p80
      %p83 = scmp.ne.s32.totalorder %s66, %s82
      %p84 = scmp.eq.s32.totalorder %s20, 0
      %p85 = por %p83, %p84
      %s86 = ssub.s32 %s21, %s33
      %p87 = scmp.eq.s32.totalorder %s86, 0
      %s89 = sadd.s32 %s88, 1
      %s90 = scalar_select %p87, %s88, %s89
      %p93 = pneg %p87
      %p94 = scmp.eq.s32.totalorder %s14, 3
      %p95 = por %p93, %p94
      %p96 = scmp.ne.s32.totalorder %s88, %s91
      %p97 = scmp.eq.s32.totalorder %s14, 0
      %p98 = por %p96, %p97
      %p99 = scmp.ne.s32.totalorder %s88, %s91
      %p100 = scmp.eq.s32.totalorder %s19, 3
      %p101 = por %p99, %p100
      %p102 = scmp.ne.s32.totalorder %s91, %s92
      %p103 = scmp.eq.s32.totalorder %s19, 0
      %p104 = por %p102, %p103
      %p105 = scmp.ne.s32.totalorder %s91, %s92
      %p106 = scmp.eq.s32.totalorder %s20, 3
      %p107 = por %p105, %p106
      %p109 = scmp.ne.s32.totalorder %s92, %s108
      %p110 = scmp.eq.s32.totalorder %s20, 0
      %p111 = por %p109, %p110
      %s112 = ssub.s32 %s22, %s29
      %p113 = scmp.eq.s32.totalorder %s112, 0
      %s115 = sadd.s32 %s114, 1
      %s116 = scalar_select %p113, %s114, %s115
      %p119 = pneg %p113
      %p120 = scmp.eq.s32.totalorder %s14, 3
      %p121 = por %p119, %p120
      %p122 = scmp.ne.s32.totalorder %s114, %s117
      %p123 = scmp.eq.s32.totalorder %s14, 0
      %p124 = por %p122, %p123
      %p125 = scmp.ne.s32.totalorder %s114, %s117
      %p126 = scmp.eq.s32.totalorder %s19, 3
      %p127 = por %p125, %p126
      %p128 = scmp.ne.s32.totalorder %s117, %s118
      %p129 = scmp.eq.s32.totalorder %s19, 0
      %p130 = por %p128, %p129
      %p131 = scmp.ne.s32.totalorder %s117, %s118
      %p132 = scmp.eq.s32.totalorder %s20, 3
      %p133 = por %p131, %p132
      %p135 = scmp.ne.s32.totalorder %s118, %s134
      %p136 = scmp.eq.s32.totalorder %s20, 0
      %p137 = por %p135, %p136
      %s138 = ssub.s32 %s21, %s33
      %s139 = ssub.s32 %s22, %s29
      %s140 = sor.u32 %s138, %s139
      %p141 = scmp.eq.s32.totalorder %s140, 0
      %s143 = sadd.s32 %s142, 1
      %s144 = scalar_select %p141, %s142, %s143
      %p147 = pneg %p141
      %p148 = scmp.eq.s32.totalorder %s14, 3
      %p149 = por %p147, %p148
      %p150 = scmp.ne.s32.totalorder %s142, %s145
      %p151 = scmp.eq.s32.totalorder %s14, 0
      %p152 = por %p150, %p151
      %p153 = scmp.ne.s32.totalorder %s142, %s145
      %p154 = scmp.eq.s32.totalorder %s19, 3
      %p155 = por %p153, %p154
      %p156 = scmp.ne.s32.totalorder %s145, %s146
      %p157 = scmp.eq.s32.totalorder %s19, 0
      %p158 = por %p156, %p157
      %p159 = scmp.ne.s32.totalorder %s145, %s146
      %p160 = scmp.eq.s32.totalorder %s20, 3
      %p161 = por %p159, %p160
      %p163 = scmp.ne.s32.totalorder %s146, %s162
      %p164 = scmp.eq.s32.totalorder %s20, 0
      %p165 = por %p163, %p164
      %p166 = scmp.le.s32.totalorder 1, %s14
      %p167 = scmp.lt.s32.totalorder %s14, 5
      %p168 = pnand %p166, %p167
      %p169 = pneg %p168
      // Predicated region
      $region9: #{tpu_custom_call.1} parent=5 // pred_check
        _
      $region10: #{tpu_custom_call.1} parent=5 // pred_check_branch
        %171 = sbr.rel (%p168) target = $region12
      $region11: #{tpu_custom_call.1} parent=5 // pred_region
        %s172 = ssub.s32 %s14, 1
        // Predicated region
        $region13: #{tpu_custom_call.1} parent=11 // pred_check
          %p173 = pneg %p78
        $region14: #{tpu_custom_call.1} parent=11 // pred_check_branch
          %175 = sbr.rel (%p173) target = $region16
        $region15: #{tpu_custom_call.1} parent=11 // pred_region
          %s176 = smul.u32 4, %s24
          %178 = vsyncadd [#allocation3], 0
          %s179 = smul.addr %s176, 8
          %s180 = scalar_lea.hbm %s1, %s179
          %s181 = sshll.u32 %s180, 4
          %s182 = int_to_ptr.hbm [resolvable:$true] %s181
          %s183 = sshll.u32 [#allocation2], 4
          %s184 = int_to_ptr.vmem [resolvable:$true] %s183
          %189 = dma.hbm_to_vmem [thread:$0]  %s182, 512, %s184, [#allocation3], 128, 128, 8
        $region16: #{tpu_custom_call.1} parent=11 // pred_fallthru
          _
        // Predicated region
        $region17: #{tpu_custom_call.1} parent=11 // pred_check
          %p190 = pneg %p130
        $region18: #{tpu_custom_call.1} parent=11 // pred_check_branch
          %192 = sbr.rel (%p190) target = $region20
        $region19: #{tpu_custom_call.1} parent=11 // pred_region
          %s193 = smul.u32 4, %s24
          %p194 = scmp.lt.s32.totalorder %s193, 3
          %s195 = scalar_select %p194, %s193, 3
          %s196 = smul.addr %s195, 8
          %s197 = scalar_lea.vmem %s3, %s196
          %s198 = smul.u32 4, %s24
        $region20: #{tpu_custom_call.1} parent=11 // pred_fallthru
          _
      $region12: #{tpu_custom_call.1} parent=5 // pred_fallthru
        _
      %p199 = scmp.lt.s32.totalorder %s14, 4
      // Predicated region
      $region21: #{tpu_custom_call.1} parent=5 // pred_check
        %p200 = pneg %p199
      $region22: #{tpu_custom_call.1} parent=5 // pred_check_branch
        %202 = sbr.rel (%p200) target = $region24
      $region23: #{tpu_custom_call.1} parent=5 // pred_region
        // Predicated region
        $region25: #{tpu_custom_call.1} parent=23 // pred_check
          %p203 = pneg %p46
        $region26: #{tpu_custom_call.1} parent=23 // pred_check_branch
          %205 = sbr.rel (%p203) target = $region28
        $region27: #{tpu_custom_call.1} parent=23 // pred_region
          %p206 = scmp.lt.s32.totalorder %s21, 3
          %s207 = scalar_select %p206, %s21, 3
          %s208 = smul.addr %s207, 8
          %s209 = scalar_lea.vmem %s0, %s208
        $region28: #{tpu_custom_call.1} parent=23 // pred_fallthru
          _
        // Predicated region
        $region29: #{tpu_custom_call.1} parent=23 // pred_check
          %p210 = pneg %p98
        $region30: #{tpu_custom_call.1} parent=23 // pred_check_branch
          %212 = sbr.rel (%p210) target = $region32
        $region31: #{tpu_custom_call.1} parent=23 // pred_region
          %p213 = scmp.lt.s32.totalorder %s21, 3
          %s214 = scalar_select %p213, %s21, 3
          %s215 = scalar_lea.vmem %s2, %s214
        $region32: #{tpu_custom_call.1} parent=23 // pred_fallthru
          _
      $region24: #{tpu_custom_call.1} parent=5 // pred_fallthru
        _
      %p216 = scmp.le.s32.totalorder 1, %s14
      %p217 = scmp.lt.s32.totalorder %s14, 5
      %p218 = pnand %p216, %p217
      %p219 = pneg %p218
      // Predicated region
      $region33: #{tpu_custom_call.1} parent=5 // pred_check
        _
      $region34: #{tpu_custom_call.1} parent=5 // pred_check_branch
        %221 = sbr.rel (%p218) target = $region36
      $region35: #{tpu_custom_call.1} parent=5 // pred_region
        %s222 = ssub.s32 %s14, 1
        // Predicated region
        $region37: #{tpu_custom_call.1} parent=35 // pred_check
          %p223 = pneg %p78
        $region38: #{tpu_custom_call.1} parent=35 // pred_check_branch
          %225 = sbr.rel (%p223) target = $region40
        $region39: #{tpu_custom_call.1} parent=35 // pred_region
          %227 = dma.done [#allocation3], 512
        $region40: #{tpu_custom_call.1} parent=35 // pred_fallthru
          _
        %p228 = scmp.lt.s32.totalorder %s23, 3
        %s229 = scalar_select %p228, %s23, 3
        %s230 = smul.addr %s229, 8
        %s231 = scalar_lea.vmem %s0, %s230
        %p232 = pneg %p52
        %p233 = pneg %p49
        %p234 = pneg %p78
        %p235 = pneg %p75
        %p236 = scmp.lt.s32.totalorder %s23, 3
        %s237 = scalar_select %p236, %s23, 3
        %s238 = scalar_lea.vmem %s2, %s237
        %p239 = pneg %p104
        %p240 = pneg %p101
        %s241 = smul.u32 4, %s24
        %p242 = scmp.lt.s32.totalorder %s241, 3
        %s243 = scalar_select %p242, %s241, 3
        %s244 = smul.addr %s243, 8
        %s245 = scalar_lea.vmem %s3, %s244
        %p246 = pneg %p130
        %p247 = pneg %p127
        %p248 = pneg %p158
        %p249 = pneg %p155
        %s250 = sand.u32 %s145, 1
        %s251 = scalar_lea.sflag [#allocation4], %s250
        %s252 = sand.u32 %s145, 1
        %s253 = scalar_lea.vmem [#allocation5], %s252
        %p254 = scmp.lt.s32.totalorder %s23, 3
        %s255 = scalar_select %p254, %s23, 3
        %s256 = smul.addr %s255, 8
        %s257 = scalar_lea.vmem %s0, %s256
        %s258 = smul.u32 4, %s24
        %p259 = scmp.lt.s32.totalorder %s23, 3
        %s260 = scalar_select %p259, %s23, 3
        %s261 = scalar_lea.vmem %s2, %s260
        %s262 = smul.u32 4, %s24
        %p263 = scmp.lt.s32.totalorder %s262, 3
        %s264 = scalar_select %p263, %s262, 3
        %s265 = smul.addr %s264, 8
        %s266 = scalar_lea.vmem %s3, %s265
        %s267 = smul.u32 4, %s24
        %v268 = vld [vmem:[%s257] sm:$0xff]
        %v269 = vld [vmem:[#allocation2] sm:$0xff]
        %v270 = vld [vmem:[#allocation2 + $0x8] sm:$0xff]
        %v271 = vld [vmem:[#allocation2 + $0x10] sm:$0xff]
        %v272 = vld [vmem:[#allocation2 + $0x18] sm:$0xff]
        %v273 = vld [vmem:[%s261] sm:$0x1]
        %v274 = vld [vmem:[%s266] sm:$0xff]
        %v275 = vld [vmem:[%s266 + $0x8] sm:$0xff]
        %v276 = vld [vmem:[%s266 + $0x10] sm:$0xff]
        %v277 = vld [vmem:[%s266 + $0x18] sm:$0xff]
        %v278 = vmul.f32 %v268, %v268
        %vm279 = vcmask 261120
        %v280 = vsel %vm279, %v278, 0.0
        %281 = vadd.xlane.f32.xlu0 %v280
        %v282 = vpop.xlane.xlu0 %281
        %v283 = vrsqrt.pop %v282
        %v284 = vmul.f32 %v283, %v282
        %v285 = vmul.f32 %v284, %v283
        %v286 = vmul.f32 0.5, %v285
        %v287 = vsub.f32 1.5, %v286
        %v288 = vmul.f32 %v283, %v287
        %v289 = vmul.f32 %v282, %v288
        %vm290 = vcmp.eq.f32.partialorder %v282, inf
        %v291 = vsel %vm290, %v282, %v289
        %vm292 = vcmp.eq.f32.partialorder %v282, 0.0
        %v293 = vand.u32 %v282, 2147483648
        %v294 = vsel %vm292, %v293, %v291
        %v295 = vadd.f32 %v294, 1e-08
        %v296 = vrcp.pop %v295
        %v297 = vmul.f32 %v295, %v296
        %v298 = vsub.f32 1.0, %v297
        %v299 = vmul.f32 %v296, %v298
        %v300 = vadd.f32 %v296, %v299
        %vm301 = vweird.f32 %v295
        %vm302 = vweird.f32 %v296
        %vm303 = vmor %vm301, %vm302
        %v304 = vsel %vm303, %v296, %v300
        %v305 = vand.u32 2147483647, %v295
        %vm306 = vcmp.eq.f32.partialorder %v305, 8.507059e+37
        %v307 = vand.u32 %v295, 2147483648
        %v308 = vor.u32 1.1754944e-38, %v307
        %v309 = vsel %vm306, %v308, %v304
        %v310 = vmul.f32 %v268, %v309
        %v311 = vlaneseq
        %v312 = vshrl.u32 %v311, 7
        %v313 = vlaneseq
        %v314 = vand.u32 %v313, 127
        %vm315 = vcmp.eq.s32.totalorder %v312, %v314
        %v316 = vsel %vm315, %v294, 0.0
        %vm317 = vcmask 64512
        %v318 = vsel %vm317, %v316, 0.0
        %v319 = vrot.slane %v318, 4
        %v320 = vadd.f32 %v318, %v319
        %v321 = vrot.slane %v320, 2
        %v322 = vadd.f32 %v320, %v321
        %v323 = vrot.slane %v322, 1
        %v324 = vadd.f32 %v322, %v323
        %v325 = vmul.f32 %v269, %v269
        %v326 = vmul.f32 %v270, %v270
        %v327 = vmul.f32 %v271, %v271
        %v328 = vmul.f32 %v272, %v272
        %v329 = vsel %vm279, %v325, 0.0
        %330 = vadd.xlane.f32.xlu0 %v329
        %v331 = vpop.xlane.xlu0 %330
        %v332 = vsel %vm279, %v326, 0.0
        %333 = vadd.xlane.f32.xlu0 %v332
        %v334 = vpop.xlane.xlu0 %333
        %v335 = vsel %vm279, %v327, 0.0
        %336 = vadd.xlane.f32.xlu0 %v335
        %v337 = vpop.xlane.xlu0 %336
        %v338 = vsel %vm279, %v328, 0.0
        %339 = vadd.xlane.f32.xlu0 %v338
        %v340 = vpop.xlane.xlu0 %339
        %v341 = vrsqrt.pop %v331
        %v342 = vmul.f32 %v341, %v331
        %v343 = vmul.f32 %v342, %v341
        %v344 = vmul.f32 0.5, %v343
        %v345 = vsub.f32 1.5, %v344
        %v346 = vmul.f32 %v341, %v345
        %v347 = vmul.f32 %v331, %v346
        %vm348 = vcmp.eq.f32.partialorder %v331, inf
        %v349 = vsel %vm348, %v331, %v347
        %vm350 = vcmp.eq.f32.partialorder %v331, 0.0
        %v351 = vand.u32 %v331, 2147483648
        %v352 = vsel %vm350, %v351, %v349
        %v353 = vrsqrt.pop %v334
        %v354 = vmul.f32 %v353, %v334
        %v355 = vmul.f32 %v354, %v353
        %v356 = vmul.f32 0.5, %v355
        %v357 = vsub.f32 1.5, %v356
        %v358 = vmul.f32 %v353, %v357
        %v359 = vmul.f32 %v334, %v358
        %vm360 = vcmp.eq.f32.partialorder %v334, inf
        %v361 = vsel %vm360, %v334, %v359
        %vm362 = vcmp.eq.f32.partialorder %v334, 0.0
        %v363 = vand.u32 %v334, 2147483648
        %v364 = vsel %vm362, %v363, %v361
        %v365 = vrsqrt.pop %v337
        %v366 = vmul.f32 %v365, %v337
        %v367 = vmul.f32 %v366, %v365
        %v368 = vmul.f32 0.5, %v367
        %v369 = vsub.f32 1.5, %v368
        %v370 = vmul.f32 %v365, %v369
        %v371 = vmul.f32 %v337, %v370
        %vm372 = vcmp.eq.f32.partialorder %v337, inf
        %v373 = vsel %vm372, %v337, %v371
        %vm374 = vcmp.eq.f32.partialorder %v337, 0.0
        %v375 = vand.u32 %v337, 2147483648
        %v376 = vsel %vm374, %v375, %v373
        %v377 = vrsqrt.pop %v340
        %v378 = vmul.f32 %v377, %v340
        %v379 = vmul.f32 %v378, %v377
        %v380 = vmul.f32 0.5, %v379
        %v381 = vsub.f32 1.5, %v380
        %v382 = vmul.f32 %v377, %v381
        %v383 = vmul.f32 %v340, %v382
        %vm384 = vcmp.eq.f32.partialorder %v340, inf
        %v385 = vsel %vm384, %v340, %v383
        %vm386 = vcmp.eq.f32.partialorder %v340, 0.0
        %v387 = vand.u32 %v340, 2147483648
        %v388 = vsel %vm386, %v387, %v385
        %v389 = vadd.f32 %v352, 1e-08
        %v390 = vadd.f32 %v364, 1e-08
        %v391 = vadd.f32 %v376, 1e-08
        %v392 = vadd.f32 %v388, 1e-08
        %v393 = vrcp.pop %v389
        %v394 = vmul.f32 %v389, %v393
        %v395 = vsub.f32 1.0, %v394
        %v396 = vmul.f32 %v393, %v395
        %v397 = vadd.f32 %v393, %v396
        %vm398 = vweird.f32 %v389
        %vm399 = vweird.f32 %v393
        %vm400 = vmor %vm398, %vm399
        %v401 = vsel %vm400, %v393, %v397
        %v402 = vand.u32 2147483647, %v389
        %vm403 = vcmp.eq.f32.partialorder %v402, 8.507059e+37
        %v404 = vand.u32 %v389, 2147483648
        %v405 = vor.u32 1.1754944e-38, %v404
        %v406 = vsel %vm403, %v405, %v401
        %v407 = vmul.f32 %v269, %v406
        %v408 = vrcp.pop %v390
        %v409 = vmul.f32 %v390, %v408
        %v410 = vsub.f32 1.0, %v409
        %v411 = vmul.f32 %v408, %v410
        %v412 = vadd.f32 %v408, %v411
        %vm413 = vweird.f32 %v390
        %vm414 = vweird.f32 %v408
        %vm415 = vmor %vm413, %vm414
        %v416 = vsel %vm415, %v408, %v412
        %v417 = vand.u32 2147483647, %v390
        %vm418 = vcmp.eq.f32.partialorder %v417, 8.507059e+37
        %v419 = vand.u32 %v390, 2147483648
        %v420 = vor.u32 1.1754944e-38, %v419
        %v421 = vsel %vm418, %v420, %v416
        %v422 = vmul.f32 %v270, %v421
        %v423 = vrcp.pop %v391
        %v424 = vmul.f32 %v391, %v423
        %v425 = vsub.f32 1.0, %v424
        %v426 = vmul.f32 %v423, %v425
        %v427 = vadd.f32 %v423, %v426
        %vm428 = vweird.f32 %v391
        %vm429 = vweird.f32 %v423
        %vm430 = vmor %vm428, %vm429
        %v431 = vsel %vm430, %v423, %v427
        %v432 = vand.u32 2147483647, %v391
        %vm433 = vcmp.eq.f32.partialorder %v432, 8.507059e+37
        %v434 = vand.u32 %v391, 2147483648
        %v435 = vor.u32 1.1754944e-38, %v434
        %v436 = vsel %vm433, %v435, %v431
        %v437 = vmul.f32 %v271, %v436
        %v438 = vrcp.pop %v392
        %v439 = vmul.f32 %v392, %v438
        %v440 = vsub.f32 1.0, %v439
        %v441 = vmul.f32 %v438, %v440
        %v442 = vadd.f32 %v438, %v441
        %vm443 = vweird.f32 %v392
        %vm444 = vweird.f32 %v438
        %vm445 = vmor %vm443, %vm444
        %v446 = vsel %vm445, %v438, %v442
        %v447 = vand.u32 2147483647, %v392
        %vm448 = vcmp.eq.f32.partialorder %v447, 8.507059e+37
        %v449 = vand.u32 %v392, 2147483648
        %v450 = vor.u32 1.1754944e-38, %v449
        %v451 = vsel %vm448, %v450, %v446
        %v452 = vmul.f32 %v272, %v451
        %v454 = vsel %vm279, %v407, 0
        %v457 = vsel %vm279, %v422, 0
        %v460 = vsel %vm279, %v437, 0
        %v463 = vsel %vm279, %v452, 0
        %v466 = vsel %vm279, %v310, 0
        %468 = vmatpush.xpose.msra.mxu0 0.0
        %469 = vmatpush.xpose.msra.mxu0 0.0
        %470 = vmatpush.xpose.msra.mxu0 0.0
        %471 = vmatpush.xpose.msra.mxu0 0.0
        %472 = vmatpush.xpose.msra.mxu0 0.0
        %473 = vmatpush.xpose.msra.mxu0 0.0
        %474 = vmatpush.xpose.msra.mxu0 0.0
        %475 = vmatpush.xpose.msra.mxu0 0.0
        %476 = vmatpush.xpose.msra.mxu0 0.0
        %477 = vmatpush.xpose.msra.mxu0 0.0
        %478 = vmatpush.xpose.msra.mxu0 0.0
        %479 = vmatpush.xpose.msra.mxu0 0.0
        %480 = vmatpush.xpose.msra.mxu0 0.0
        %481 = vmatpush.xpose.msra.mxu0 0.0
        %482 = vmatpush.xpose.msra.mxu0 0.0
        %483 = vmatpush.xpose.msra.mxu0 %v466
        %484 = vmatmul.f32.gmra.mxu0 %v454
        %v485 = vpop.f32.mrf.mxu0
        %v486 = vadd.f32 0.0, %v485
        %487 = vmatmul.f32.gmra.mxu0 %v457
        %v488 = vpop.f32.mrf.mxu0
        %v489 = vadd.f32 0.0, %v488
        %490 = vmatmul.f32.gmra.mxu0 %v460
        %v491 = vpop.f32.mrf.mxu0
        %v492 = vadd.f32 0.0, %v491
        %493 = vmatmul.f32.gmra.mxu0 %v463
        %v494 = vpop.f32.mrf.mxu0
        %v495 = vadd.f32 0.0, %v494
        %496 = vdwg.mxu0
        %vm497 = vcmp.gt.f32.partialorder %v486, 0.0
        %vm498 = vcmp.gt.f32.partialorder %v489, 0.0
        %vm499 = vcmp.gt.f32.partialorder %v492, 0.0
        %vm500 = vcmp.gt.f32.partialorder %v495, 0.0
        %v501 = vmul.f32 %v486, 0.1
        %v502 = vmul.f32 %v489, 0.1
        %v503 = vmul.f32 %v492, 0.1
        %v504 = vmul.f32 %v495, 0.1
        %v505 = vsel %vm497, %v486, %v501
        %v506 = vsel %vm498, %v489, %v502
        %v507 = vsel %vm499, %v492, %v503
        %v508 = vsel %vm500, %v495, %v504
        %v509 = vmul.f32 %v505, %v505
        %v510 = vmul.f32 %v506, %v506
        %v511 = vmul.f32 %v507, %v507
        %v512 = vmul.f32 %v508, %v508
        %v513 = vsel %vm317, %v509, 0.0
        %v514 = vrot.slane %v513, 4
        %v515 = vadd.f32 %v513, %v514
        %v516 = vrot.slane %v515, 2
        %v517 = vadd.f32 %v515, %v516
        %v518 = vrot.slane %v517, 1
        %v519 = vadd.f32 %v517, %v518
        %v520 = vsel %vm317, %v510, 0.0
        %v521 = vrot.slane %v520, 4
        %v522 = vadd.f32 %v520, %v521
        %v523 = vrot.slane %v522, 2
        %v524 = vadd.f32 %v522, %v523
        %v525 = vrot.slane %v524, 1
        %v526 = vadd.f32 %v524, %v525
        %v527 = vsel %vm317, %v511, 0.0
        %v528 = vrot.slane %v527, 4
        %v529 = vadd.f32 %v527, %v528
        %v530 = vrot.slane %v529, 2
        %v531 = vadd.f32 %v529, %v530
        %v532 = vrot.slane %v531, 1
        %v533 = vadd.f32 %v531, %v532
        %v534 = vsel %vm317, %v512, 0.0
        %v535 = vrot.slane %v534, 4
        %v536 = vadd.f32 %v534, %v535
        %v537 = vrot.slane %v536, 2
        %v538 = vadd.f32 %v536, %v537
        %v539 = vrot.slane %v538, 1
        %v540 = vadd.f32 %v538, %v539
        %v541 = vrsqrt.pop %v519
        %v542 = vmul.f32 %v541, %v519
        %v543 = vmul.f32 %v542, %v541
        %v544 = vmul.f32 0.5, %v543
        %v545 = vsub.f32 1.5, %v544
        %v546 = vmul.f32 %v541, %v545
        %v547 = vmul.f32 %v519, %v546
        %vm548 = vcmp.eq.f32.partialorder %v519, inf
        %v549 = vsel %vm548, %v519, %v547
        %vm550 = vcmp.eq.f32.partialorder %v519, 0.0
        %v551 = vand.u32 %v519, 2147483648
        %v552 = vsel %vm550, %v551, %v549
        %v553 = vrsqrt.pop %v526
        %v554 = vmul.f32 %v553, %v526
        %v555 = vmul.f32 %v554, %v553
        %v556 = vmul.f32 0.5, %v555
        %v557 = vsub.f32 1.5, %v556
        %v558 = vmul.f32 %v553, %v557
        %v559 = vmul.f32 %v526, %v558
        %vm560 = vcmp.eq.f32.partialorder %v526, inf
        %v561 = vsel %vm560, %v526, %v559
        %vm562 = vcmp.eq.f32.partialorder %v526, 0.0
        %v563 = vand.u32 %v526, 2147483648
        %v564 = vsel %vm562, %v563, %v561
        %v565 = vrsqrt.pop %v533
        %v566 = vmul.f32 %v565, %v533
        %v567 = vmul.f32 %v566, %v565
        %v568 = vmul.f32 0.5, %v567
        %v569 = vsub.f32 1.5, %v568
        %v570 = vmul.f32 %v565, %v569
        %v571 = vmul.f32 %v533, %v570
        %vm572 = vcmp.eq.f32.partialorder %v533, inf
        %v573 = vsel %vm572, %v533, %v571
        %vm574 = vcmp.eq.f32.partialorder %v533, 0.0
        %v575 = vand.u32 %v533, 2147483648
        %v576 = vsel %vm574, %v575, %v573
        %v577 = vrsqrt.pop %v540
        %v578 = vmul.f32 %v577, %v540
        %v579 = vmul.f32 %v578, %v577
        %v580 = vmul.f32 0.5, %v579
        %v581 = vsub.f32 1.5, %v580
        %v582 = vmul.f32 %v577, %v581
        %v583 = vmul.f32 %v540, %v582
        %vm584 = vcmp.eq.f32.partialorder %v540, inf
        %v585 = vsel %vm584, %v540, %v583
        %vm586 = vcmp.eq.f32.partialorder %v540, 0.0
        %v587 = vand.u32 %v540, 2147483648
        %v588 = vsel %vm586, %v587, %v585
        %v589 = vadd.f32 %v552, 1e-08
        %v590 = vadd.f32 %v564, 1e-08
        %v591 = vadd.f32 %v576, 1e-08
        %v592 = vadd.f32 %v588, 1e-08
        %v593 = vrcp.pop %v589
        %v594 = vmul.f32 %v589, %v593
        %v595 = vsub.f32 1.0, %v594
        %v596 = vmul.f32 %v593, %v595
        %v597 = vadd.f32 %v593, %v596
        %vm598 = vweird.f32 %v589
        %vm599 = vweird.f32 %v593
        %vm600 = vmor %vm598, %vm599
        %v601 = vsel %vm600, %v593, %v597
        %v602 = vand.u32 2147483647, %v589
        %vm603 = vcmp.eq.f32.partialorder %v602, 8.507059e+37
        %v604 = vand.u32 %v589, 2147483648
        %v605 = vor.u32 1.1754944e-38, %v604
        %v606 = vsel %vm603, %v605, %v601
        %v607 = vmul.f32 %v505, %v606
        %v608 = vrcp.pop %v590
        %v609 = vmul.f32 %v590, %v608
        %v610 = vsub.f32 1.0, %v609
        %v611 = vmul.f32 %v608, %v610
        %v612 = vadd.f32 %v608, %v611
        %vm613 = vweird.f32 %v590
        %vm614 = vweird.f32 %v608
        %vm615 = vmor %vm613, %vm614
        %v616 = vsel %vm615, %v608, %v612
        %v617 = vand.u32 2147483647, %v590
        %vm618 = vcmp.eq.f32.partialorder %v617, 8.507059e+37
        %v619 = vand.u32 %v590, 2147483648
        %v620 = vor.u32 1.1754944e-38, %v619
        %v621 = vsel %vm618, %v620, %v616
        %v622 = vmul.f32 %v506, %v621
        %v623 = vrcp.pop %v591
        %v624 = vmul.f32 %v591, %v623
        %v625 = vsub.f32 1.0, %v624
        %v626 = vmul.f32 %v623, %v625
        %v627 = vadd.f32 %v623, %v626
        %vm628 = vweird.f32 %v591
        %vm629 = vweird.f32 %v623
        %vm630 = vmor %vm628, %vm629
        %v631 = vsel %vm630, %v623, %v627
        %v632 = vand.u32 2147483647, %v591
        %vm633 = vcmp.eq.f32.partialorder %v632, 8.507059e+37
        %v634 = vand.u32 %v591, 2147483648
        %v635 = vor.u32 1.1754944e-38, %v634
        %v636 = vsel %vm633, %v635, %v631
        %v637 = vmul.f32 %v507, %v636
        %v638 = vrcp.pop %v592
        %v639 = vmul.f32 %v592, %v638
        %v640 = vsub.f32 1.0, %v639
        %v641 = vmul.f32 %v638, %v640
        %v642 = vadd.f32 %v638, %v641
        %vm643 = vweird.f32 %v592
        %vm644 = vweird.f32 %v638
        %vm645 = vmor %vm643, %vm644
        %v646 = vsel %vm645, %v638, %v642
        %v647 = vand.u32 2147483647, %v592
        %vm648 = vcmp.eq.f32.partialorder %v647, 8.507059e+37
        %v649 = vand.u32 %v592, 2147483648
        %v650 = vor.u32 1.1754944e-38, %v649
        %v651 = vsel %vm648, %v650, %v646
        %v652 = vmul.f32 %v508, %v651
        %654 = vset.pattern.permute.xlu0 0
        %655 = vperm.xlu0 %654, %v274
        %v656 = vpop.permute.xlu0 %655
        %659 = vset.pattern.permute.xlu0 0
        %660 = vperm.xlu0 %659, %v275
        %v661 = vpop.permute.xlu0 %660
        %664 = vset.pattern.permute.xlu0 0
        %665 = vperm.xlu0 %664, %v276
        %v666 = vpop.permute.xlu0 %665
        %669 = vset.pattern.permute.xlu0 0
        %670 = vperm.xlu0 %669, %v277
        %v671 = vpop.permute.xlu0 %670
        %v673 = vadd.f32 %v607, %v656
        %v674 = vadd.f32 %v622, %v661
        %v675 = vadd.f32 %v637, %v666
        %v676 = vadd.f32 %v652, %v671
        %v678 = vperm.slane %v273, 0
        %v680 = vadd.f32 %v673, %v678
        %v681 = vadd.f32 %v674, %v678
        %v682 = vadd.f32 %v675, %v678
        %v683 = vadd.f32 %v676, %v678
        %v684 = vmul.f32 %v680, 20.0
        %v685 = vmul.f32 %v681, 20.0
        %v686 = vmul.f32 %v682, 20.0
        %v687 = vmul.f32 %v683, 20.0
        %v688 = vsel %vm317, %v684, -inf
        %689 = vmax.xlane.f32.xlu0 %v688
        %v690 = vpop.xlane.xlu0 %689
        %v691 = vsel %vm317, %v685, -inf
        %692 = vmax.xlane.f32.xlu0 %v691
        %v693 = vpop.xlane.xlu0 %692
        %v694 = vsel %vm317, %v686, -inf
        %695 = vmax.xlane.f32.xlu0 %v694
        %v696 = vpop.xlane.xlu0 %695
        %v697 = vsel %vm317, %v687, -inf
        %698 = vmax.xlane.f32.xlu0 %v697
        %v699 = vpop.xlane.xlu0 %698
        %v700 = vsub.f32 %v684, %v690
        %v701 = vsub.f32 %v685, %v693
        %v702 = vsub.f32 %v686, %v696
        %v703 = vsub.f32 %v687, %v699
        %v704 = vmul.f32 %v700, 1.442695
        %v705 = vpow.pop %v704
        %v706 = vmul.f32 %v701, 1.442695
        %v707 = vpow.pop %v706
        %v708 = vmul.f32 %v702, 1.442695
        %v709 = vpow.pop %v708
        %v710 = vmul.f32 %v703, 1.442695
        %v711 = vpow.pop %v710
        %v712 = vsel %vm317, %v705, 0.0
        %713 = vadd.xlane.f32.xlu0 %v712
        %v714 = vpop.xlane.xlu0 %713
        %v715 = vsel %vm317, %v707, 0.0
        %716 = vadd.xlane.f32.xlu0 %v715
        %v717 = vpop.xlane.xlu0 %716
        %v718 = vsel %vm317, %v709, 0.0
        %719 = vadd.xlane.f32.xlu0 %v718
        %v720 = vpop.xlane.xlu0 %719
        %v721 = vsel %vm317, %v711, 0.0
        %722 = vadd.xlane.f32.xlu0 %v721
        %v723 = vpop.xlane.xlu0 %722
        %v724 = vrcp.pop %v714
        %v725 = vmul.f32 %v714, %v724
        %v726 = vsub.f32 1.0, %v725
        %v727 = vmul.f32 %v724, %v726
        %v728 = vadd.f32 %v724, %v727
        %vm729 = vweird.f32 %v714
        %vm730 = vweird.f32 %v724
        %vm731 = vmor %vm729, %vm730
        %v732 = vsel %vm731, %v724, %v728
        %v733 = vand.u32 2147483647, %v714
        %vm734 = vcmp.eq.f32.partialorder %v733, 8.507059e+37
        %v735 = vand.u32 %v714, 2147483648
        %v736 = vor.u32 1.1754944e-38, %v735
        %v737 = vsel %vm734, %v736, %v732
        %v738 = vmul.f32 %v705, %v737
        %v739 = vrcp.pop %v717
        %v740 = vmul.f32 %v717, %v739
        %v741 = vsub.f32 1.0, %v740
        %v742 = vmul.f32 %v739, %v741
        %v743 = vadd.f32 %v739, %v742
        %vm744 = vweird.f32 %v717
        %vm745 = vweird.f32 %v739
        %vm746 = vmor %vm744, %vm745
        %v747 = vsel %vm746, %v739, %v743
        %v748 = vand.u32 2147483647, %v717
        %vm749 = vcmp.eq.f32.partialorder %v748, 8.507059e+37
        %v750 = vand.u32 %v717, 2147483648
        %v751 = vor.u32 1.1754944e-38, %v750
        %v752 = vsel %vm749, %v751, %v747
        %v753 = vmul.f32 %v707, %v752
        %v754 = vrcp.pop %v720
        %v755 = vmul.f32 %v720, %v754
        %v756 = vsub.f32 1.0, %v755
        %v757 = vmul.f32 %v754, %v756
        %v758 = vadd.f32 %v754, %v757
        %vm759 = vweird.f32 %v720
        %vm760 = vweird.f32 %v754
        %vm761 = vmor %vm759, %vm760
        %v762 = vsel %vm761, %v754, %v758
        %v763 = vand.u32 2147483647, %v720
        %vm764 = vcmp.eq.f32.partialorder %v763, 8.507059e+37
        %v765 = vand.u32 %v720, 2147483648
        %v766 = vor.u32 1.1754944e-38, %v765
        %v767 = vsel %vm764, %v766, %v762
        %v768 = vmul.f32 %v709, %v767
        %v769 = vrcp.pop %v723
        %v770 = vmul.f32 %v723, %v769
        %v771 = vsub.f32 1.0, %v770
        %v772 = vmul.f32 %v769, %v771
        %v773 = vadd.f32 %v769, %v772
        %vm774 = vweird.f32 %v723
        %vm775 = vweird.f32 %v769
        %vm776 = vmor %vm774, %vm775
        %v777 = vsel %vm776, %v769, %v773
        %v778 = vand.u32 2147483647, %v723
        %vm779 = vcmp.eq.f32.partialorder %v778, 8.507059e+37
        %v780 = vand.u32 %v723, 2147483648
        %v781 = vor.u32 1.1754944e-38, %v780
        %v782 = vsel %vm779, %v781, %v777
        %v783 = vmul.f32 %v711, %v782
        %v785 = vsel %vm317, %v738, 0
        %v788 = vsel %vm317, %v753, 0
        %v791 = vsel %vm317, %v768, 0
        %v794 = vsel %vm317, %v783, 0
        %796 = vmatpush.msra.mxu0 0.0
        %797 = vmatpush.msra.mxu0 0.0
        %798 = vmatpush.msra.mxu0 0.0
        %799 = vmatpush.msra.mxu0 0.0
        %800 = vmatpush.msra.mxu0 0.0
        %801 = vmatpush.msra.mxu0 0.0
        %802 = vmatpush.msra.mxu0 0.0
        %803 = vmatpush.msra.mxu0 0.0
        %804 = vmatpush.msra.mxu0 0.0
        %805 = vmatpush.msra.mxu0 0.0
        %806 = vmatpush.msra.mxu0 0.0
        %807 = vmatpush.msra.mxu0 0.0
        %808 = vmatpush.msra.mxu0 0.0
        %809 = vmatpush.msra.mxu0 0.0
        %810 = vmatpush.msra.mxu0 0.0
        %811 = vmatpush.msra.mxu0 %v310
        %812 = vmatmul.f32.gmra.mxu0 %v785
        %v813 = vpop.f32.mrf.mxu0
        %v814 = vadd.f32 0.0, %v813
        %815 = vmatmul.f32.gmra.mxu0 %v788
        %v816 = vpop.f32.mrf.mxu0
        %v817 = vadd.f32 0.0, %v816
        %818 = vmatmul.f32.gmra.mxu0 %v791
        %v819 = vpop.f32.mrf.mxu0
        %v820 = vadd.f32 0.0, %v819
        %821 = vmatmul.f32.gmra.mxu0 %v794
        %v822 = vpop.f32.mrf.mxu0
        %v823 = vadd.f32 0.0, %v822
        %824 = vdwg.mxu0
        %v825 = vmul.f32 %v269, %v814
        %v826 = vmul.f32 %v270, %v817
        %v827 = vmul.f32 %v271, %v820
        %v828 = vmul.f32 %v272, %v823
        %v829 = vsel %vm279, %v825, 0.0
        %830 = vadd.xlane.f32.xlu0 %v829
        %v831 = vpop.xlane.xlu0 %830
        %v832 = vsel %vm279, %v826, 0.0
        %833 = vadd.xlane.f32.xlu0 %v832
        %v834 = vpop.xlane.xlu0 %833
        %v835 = vsel %vm279, %v827, 0.0
        %836 = vadd.xlane.f32.xlu0 %v835
        %v837 = vpop.xlane.xlu0 %836
        %v838 = vsel %vm279, %v828, 0.0
        %839 = vadd.xlane.f32.xlu0 %v838
        %v840 = vpop.xlane.xlu0 %839
        %v841 = vmul.f32 %v814, %v814
        %v842 = vmul.f32 %v817, %v817
        %v843 = vmul.f32 %v820, %v820
        %v844 = vmul.f32 %v823, %v823
        %v845 = vsel %vm279, %v841, 0.0
        %846 = vadd.xlane.f32.xlu0 %v845
        %v847 = vpop.xlane.xlu0 %846
        %v848 = vsel %vm279, %v842, 0.0
        %849 = vadd.xlane.f32.xlu0 %v848
        %v850 = vpop.xlane.xlu0 %849
        %v851 = vsel %vm279, %v843, 0.0
        %852 = vadd.xlane.f32.xlu0 %v851
        %v853 = vpop.xlane.xlu0 %852
        %v854 = vsel %vm279, %v844, 0.0
        %855 = vadd.xlane.f32.xlu0 %v854
        %v856 = vpop.xlane.xlu0 %855
        %v857 = vrsqrt.pop %v847
        %v858 = vmul.f32 %v857, %v847
        %v859 = vmul.f32 %v858, %v857
        %v860 = vmul.f32 0.5, %v859
        %v861 = vsub.f32 1.5, %v860
        %v862 = vmul.f32 %v857, %v861
        %v863 = vmul.f32 %v847, %v862
        %vm864 = vcmp.eq.f32.partialorder %v847, inf
        %v865 = vsel %vm864, %v847, %v863
        %vm866 = vcmp.eq.f32.partialorder %v847, 0.0
        %v867 = vand.u32 %v847, 2147483648
        %v868 = vsel %vm866, %v867, %v865
        %v869 = vrsqrt.pop %v850
        %v870 = vmul.f32 %v869, %v850
        %v871 = vmul.f32 %v870, %v869
        %v872 = vmul.f32 0.5, %v871
        %v873 = vsub.f32 1.5, %v872
        %v874 = vmul.f32 %v869, %v873
        %v875 = vmul.f32 %v850, %v874
        %vm876 = vcmp.eq.f32.partialorder %v850, inf
        %v877 = vsel %vm876, %v850, %v875
        %vm878 = vcmp.eq.f32.partialorder %v850, 0.0
        %v879 = vand.u32 %v850, 2147483648
        %v880 = vsel %vm878, %v879, %v877
        %v881 = vrsqrt.pop %v853
        %v882 = vmul.f32 %v881, %v853
        %v883 = vmul.f32 %v882, %v881
        %v884 = vmul.f32 0.5, %v883
        %v885 = vsub.f32 1.5, %v884
        %v886 = vmul.f32 %v881, %v885
        %v887 = vmul.f32 %v853, %v886
        %vm888 = vcmp.eq.f32.partialorder %v853, inf
        %v889 = vsel %vm888, %v853, %v887
        %vm890 = vcmp.eq.f32.partialorder %v853, 0.0
        %v891 = vand.u32 %v853, 2147483648
        %v892 = vsel %vm890, %v891, %v889
        %v893 = vrsqrt.pop %v856
        %v894 = vmul.f32 %v893, %v856
        %v895 = vmul.f32 %v894, %v893
        %v896 = vmul.f32 0.5, %v895
        %v897 = vsub.f32 1.5, %v896
        %v898 = vmul.f32 %v893, %v897
        %v899 = vmul.f32 %v856, %v898
        %vm900 = vcmp.eq.f32.partialorder %v856, inf
        %v901 = vsel %vm900, %v856, %v899
        %vm902 = vcmp.eq.f32.partialorder %v856, 0.0
        %v903 = vand.u32 %v856, 2147483648
        %v904 = vsel %vm902, %v903, %v901
        %v905 = vmul.f32 %v352, %v868
        %v906 = vmul.f32 %v364, %v880
        %v907 = vmul.f32 %v376, %v892
        %v908 = vmul.f32 %v388, %v904
        %v909 = vmax.f32 %v905, 1e-08
        %v910 = vmax.f32 %v906, 1e-08
        %v911 = vmax.f32 %v907, 1e-08
        %v912 = vmax.f32 %v908, 1e-08
        %v913 = vrcp.pop %v909
        %v914 = vmul.f32 %v909, %v913
        %v915 = vsub.f32 1.0, %v914
        %v916 = vmul.f32 %v913, %v915
        %v917 = vadd.f32 %v913, %v916
        %vm918 = vweird.f32 %v909
        %vm919 = vweird.f32 %v913
        %vm920 = vmor %vm918, %vm919
        %v921 = vsel %vm920, %v913, %v917
        %v922 = vand.u32 2147483647, %v909
        %vm923 = vcmp.eq.f32.partialorder %v922, 8.507059e+37
        %v924 = vand.u32 %v909, 2147483648
        %v925 = vor.u32 1.1754944e-38, %v924
        %v926 = vsel %vm923, %v925, %v921
        %v927 = vmul.f32 %v831, %v926
        %v928 = vrcp.pop %v910
        %v929 = vmul.f32 %v910, %v928
        %v930 = vsub.f32 1.0, %v929
        %v931 = vmul.f32 %v928, %v930
        %v932 = vadd.f32 %v928, %v931
        %vm933 = vweird.f32 %v910
        %vm934 = vweird.f32 %v928
        %vm935 = vmor %vm933, %vm934
        %v936 = vsel %vm935, %v928, %v932
        %v937 = vand.u32 2147483647, %v910
        %vm938 = vcmp.eq.f32.partialorder %v937, 8.507059e+37
        %v939 = vand.u32 %v910, 2147483648
        %v940 = vor.u32 1.1754944e-38, %v939
        %v941 = vsel %vm938, %v940, %v936
        %v942 = vmul.f32 %v834, %v941
        %v943 = vrcp.pop %v911
        %v944 = vmul.f32 %v911, %v943
        %v945 = vsub.f32 1.0, %v944
        %v946 = vmul.f32 %v943, %v945
        %v947 = vadd.f32 %v943, %v946
        %vm948 = vweird.f32 %v911
        %vm949 = vweird.f32 %v943
        %vm950 = vmor %vm948, %vm949
        %v951 = vsel %vm950, %v943, %v947
        %v952 = vand.u32 2147483647, %v911
        %vm953 = vcmp.eq.f32.partialorder %v952, 8.507059e+37
        %v954 = vand.u32 %v911, 2147483648
        %v955 = vor.u32 1.1754944e-38, %v954
        %v956 = vsel %vm953, %v955, %v951
        %v957 = vmul.f32 %v837, %v956
        %v958 = vrcp.pop %v912
        %v959 = vmul.f32 %v912, %v958
        %v960 = vsub.f32 1.0, %v959
        %v961 = vmul.f32 %v958, %v960
        %v962 = vadd.f32 %v958, %v961
        %vm963 = vweird.f32 %v912
        %vm964 = vweird.f32 %v958
        %vm965 = vmor %vm963, %vm964
        %v966 = vsel %vm965, %v958, %v962
        %v967 = vand.u32 2147483647, %v912
        %vm968 = vcmp.eq.f32.partialorder %v967, 8.507059e+37
        %v969 = vand.u32 %v912, 2147483648
        %v970 = vor.u32 1.1754944e-38, %v969
        %v971 = vsel %vm968, %v970, %v966
        %v972 = vmul.f32 %v840, %v971
        %v973 = vrot.slane %v927, 4
        %v974 = vadd.f32 %v927, %v973
        %v975 = vrot.slane %v974, 2
        %v976 = vadd.f32 %v974, %v975
        %v977 = vrot.slane %v976, 1
        %v978 = vadd.f32 %v976, %v977
        %v979 = vrot.slane %v942, 4
        %v980 = vadd.f32 %v942, %v979
        %v981 = vrot.slane %v980, 2
        %v982 = vadd.f32 %v980, %v981
        %v983 = vrot.slane %v982, 1
        %v984 = vadd.f32 %v982, %v983
        %v985 = vrot.slane %v957, 4
        %v986 = vadd.f32 %v957, %v985
        %v987 = vrot.slane %v986, 2
        %v988 = vadd.f32 %v986, %v987
        %v989 = vrot.slane %v988, 1
        %v990 = vadd.f32 %v988, %v989
        %v991 = vrot.slane %v972, 4
        %v992 = vadd.f32 %v972, %v991
        %v993 = vrot.slane %v992, 2
        %v994 = vadd.f32 %v992, %v993
        %v995 = vrot.slane %v994, 1
        %v996 = vadd.f32 %v994, %v995
        %v997 = vrcp.pop 8.0
        %v998 = vmul.f32 8.0, %v997
        %v999 = vsub.f32 1.0, %v998
        %v1000 = vmul.f32 %v997, %v999
        %v1001 = vadd.f32 %v997, %v1000
        %vm1002 = vweird.f32 %v997
        %v1003 = vsel %vm1002, %v997, %v1001
        %v1004 = vmul.f32 %v978, %v1003
        %v1005 = vmul.f32 %v984, %v1003
        %v1006 = vmul.f32 %v990, %v1003
        %v1007 = vmul.f32 %v996, %v1003
        %1008 = vadd.xlane.f32.xlu0 %v513
        %v1009 = vpop.xlane.xlu0 %1008
        %1010 = vadd.xlane.f32.xlu0 %v520
        %v1011 = vpop.xlane.xlu0 %1010
        %1012 = vadd.xlane.f32.xlu0 %v527
        %v1013 = vpop.xlane.xlu0 %1012
        %1014 = vadd.xlane.f32.xlu0 %v534
        %v1015 = vpop.xlane.xlu0 %1014
        %v1016 = vrsqrt.pop %v1009
        %v1017 = vmul.f32 %v1016, %v1009
        %v1018 = vmul.f32 %v1017, %v1016
        %v1019 = vmul.f32 0.5, %v1018
        %v1020 = vsub.f32 1.5, %v1019
        %v1021 = vmul.f32 %v1016, %v1020
        %v1022 = vmul.f32 %v1009, %v1021
        %vm1023 = vcmp.eq.f32.partialorder %v1009, inf
        %v1024 = vsel %vm1023, %v1009, %v1022
        %vm1025 = vcmp.eq.f32.partialorder %v1009, 0.0
        %v1026 = vand.u32 %v1009, 2147483648
        %v1027 = vsel %vm1025, %v1026, %v1024
        %v1028 = vrsqrt.pop %v1011
        %v1029 = vmul.f32 %v1028, %v1011
        %v1030 = vmul.f32 %v1029, %v1028
        %v1031 = vmul.f32 0.5, %v1030
        %v1032 = vsub.f32 1.5, %v1031
        %v1033 = vmul.f32 %v1028, %v1032
        %v1034 = vmul.f32 %v1011, %v1033
        %vm1035 = vcmp.eq.f32.partialorder %v1011, inf
        %v1036 = vsel %vm1035, %v1011, %v1034
        %vm1037 = vcmp.eq.f32.partialorder %v1011, 0.0
        %v1038 = vand.u32 %v1011, 2147483648
        %v1039 = vsel %vm1037, %v1038, %v1036
        %v1040 = vrsqrt.pop %v1013
        %v1041 = vmul.f32 %v1040, %v1013
        %v1042 = vmul.f32 %v1041, %v1040
        %v1043 = vmul.f32 0.5, %v1042
        %v1044 = vsub.f32 1.5, %v1043
        %v1045 = vmul.f32 %v1040, %v1044
        %v1046 = vmul.f32 %v1013, %v1045
        %vm1047 = vcmp.eq.f32.partialorder %v1013, inf
        %v1048 = vsel %vm1047, %v1013, %v1046
        %vm1049 = vcmp.eq.f32.partialorder %v1013, 0.0
        %v1050 = vand.u32 %v1013, 2147483648
        %v1051 = vsel %vm1049, %v1050, %v1048
        %v1052 = vrsqrt.pop %v1015
        %v1053 = vmul.f32 %v1052, %v1015
        %v1054 = vmul.f32 %v1053, %v1052
        %v1055 = vmul.f32 0.5, %v1054
        %v1056 = vsub.f32 1.5, %v1055
        %v1057 = vmul.f32 %v1052, %v1056
        %v1058 = vmul.f32 %v1015, %v1057
        %vm1059 = vcmp.eq.f32.partialorder %v1015, inf
        %v1060 = vsel %vm1059, %v1015, %v1058
        %vm1061 = vcmp.eq.f32.partialorder %v1015, 0.0
        %v1062 = vand.u32 %v1015, 2147483648
        %v1063 = vsel %vm1061, %v1062, %v1060
        %v1064 = vadd.f32 %v1027, 1e-08
        %v1065 = vadd.f32 %v1039, 1e-08
        %v1066 = vadd.f32 %v1051, 1e-08
        %v1067 = vadd.f32 %v1063, 1e-08
        %v1068 = vrcp.pop %v1064
        %v1069 = vmul.f32 %v1064, %v1068
        %v1070 = vsub.f32 1.0, %v1069
        %v1071 = vmul.f32 %v1068, %v1070
        %v1072 = vadd.f32 %v1068, %v1071
        %vm1073 = vweird.f32 %v1064
        %vm1074 = vweird.f32 %v1068
        %vm1075 = vmor %vm1073, %vm1074
        %v1076 = vsel %vm1075, %v1068, %v1072
        %v1077 = vand.u32 2147483647, %v1064
        %vm1078 = vcmp.eq.f32.partialorder %v1077, 8.507059e+37
        %v1079 = vand.u32 %v1064, 2147483648
        %v1080 = vor.u32 1.1754944e-38, %v1079
        %v1081 = vsel %vm1078, %v1080, %v1076
        %v1082 = vmul.f32 %v505, %v1081
        %v1083 = vrcp.pop %v1065
        %v1084 = vmul.f32 %v1065, %v1083
        %v1085 = vsub.f32 1.0, %v1084
        %v1086 = vmul.f32 %v1083, %v1085
        %v1087 = vadd.f32 %v1083, %v1086
        %vm1088 = vweird.f32 %v1065
        %vm1089 = vweird.f32 %v1083
        %vm1090 = vmor %vm1088, %vm1089
        %v1091 = vsel %vm1090, %v1083, %v1087
        %v1092 = vand.u32 2147483647, %v1065
        %vm1093 = vcmp.eq.f32.partialorder %v1092, 8.507059e+37
        %v1094 = vand.u32 %v1065, 2147483648
        %v1095 = vor.u32 1.1754944e-38, %v1094
        %v1096 = vsel %vm1093, %v1095, %v1091
        %v1097 = vmul.f32 %v506, %v1096
        %v1098 = vrcp.pop %v1066
        %v1099 = vmul.f32 %v1066, %v1098
        %v1100 = vsub.f32 1.0, %v1099
        %v1101 = vmul.f32 %v1098, %v1100
        %v1102 = vadd.f32 %v1098, %v1101
        %vm1103 = vweird.f32 %v1066
        %vm1104 = vweird.f32 %v1098
        %vm1105 = vmor %vm1103, %vm1104
        %v1106 = vsel %vm1105, %v1098, %v1102
        %v1107 = vand.u32 2147483647, %v1066
        %vm1108 = vcmp.eq.f32.partialorder %v1107, 8.507059e+37
        %v1109 = vand.u32 %v1066, 2147483648
        %v1110 = vor.u32 1.1754944e-38, %v1109
        %v1111 = vsel %vm1108, %v1110, %v1106
        %v1112 = vmul.f32 %v507, %v1111
        %v1113 = vrcp.pop %v1067
        %v1114 = vmul.f32 %v1067, %v1113
        %v1115 = vsub.f32 1.0, %v1114
        %v1116 = vmul.f32 %v1113, %v1115
        %v1117 = vadd.f32 %v1113, %v1116
        %vm1118 = vweird.f32 %v1067
        %vm1119 = vweird.f32 %v1113
        %vm1120 = vmor %vm1118, %vm1119
        %v1121 = vsel %vm1120, %v1113, %v1117
        %v1122 = vand.u32 2147483647, %v1067
        %vm1123 = vcmp.eq.f32.partialorder %v1122, 8.507059e+37
        %v1124 = vand.u32 %v1067, 2147483648
        %v1125 = vor.u32 1.1754944e-38, %v1124
        %v1126 = vsel %vm1123, %v1125, %v1121
        %v1127 = vmul.f32 %v508, %v1126
        %v1128 = vadd.f32 %v1082, %v656
        %v1129 = vadd.f32 %v1097, %v661
        %v1130 = vadd.f32 %v1112, %v666
        %v1131 = vadd.f32 %v1127, %v671
        %v1132 = vadd.f32 %v1128, %v678
        %v1133 = vadd.f32 %v1129, %v678
        %v1134 = vadd.f32 %v1130, %v678
        %v1135 = vadd.f32 %v1131, %v678
        %v1136 = vmul.f32 %v1132, 20.0
        %v1137 = vmul.f32 %v1133, 20.0
        %v1138 = vmul.f32 %v1134, 20.0
        %v1139 = vmul.f32 %v1135, 20.0
        %v1140 = vsel %vm317, %v1136, -inf
        %v1141 = vrot.slane %v1140, 4
        %v1142 = vmax.f32 %v1140, %v1141
        %v1143 = vrot.slane %v1142, 2
        %v1144 = vmax.f32 %v1142, %v1143
        %v1145 = vrot.slane %v1144, 1
        %v1146 = vmax.f32 %v1144, %v1145
        %v1147 = vsel %vm317, %v1137, -inf
        %v1148 = vrot.slane %v1147, 4
        %v1149 = vmax.f32 %v1147, %v1148
        %v1150 = vrot.slane %v1149, 2
        %v1151 = vmax.f32 %v1149, %v1150
        %v1152 = vrot.slane %v1151, 1
        %v1153 = vmax.f32 %v1151, %v1152
        %v1154 = vsel %vm317, %v1138, -inf
        %v1155 = vrot.slane %v1154, 4
        %v1156 = vmax.f32 %v1154, %v1155
        %v1157 = vrot.slane %v1156, 2
        %v1158 = vmax.f32 %v1156, %v1157
        %v1159 = vrot.slane %v1158, 1
        %v1160 = vmax.f32 %v1158, %v1159
        %v1161 = vsel %vm317, %v1139, -inf
        %v1162 = vrot.slane %v1161, 4
        %v1163 = vmax.f32 %v1161, %v1162
        %v1164 = vrot.slane %v1163, 2
        %v1165 = vmax.f32 %v1163, %v1164
        %v1166 = vrot.slane %v1165, 1
        %v1167 = vmax.f32 %v1165, %v1166
        %v1168 = vsub.f32 %v1136, %v1146
        %v1169 = vsub.f32 %v1137, %v1153
        %v1170 = vsub.f32 %v1138, %v1160
        %v1171 = vsub.f32 %v1139, %v1167
        %v1172 = vmul.f32 %v1168, 1.442695
        %v1173 = vpow.pop %v1172
        %v1174 = vmul.f32 %v1169, 1.442695
        %v1175 = vpow.pop %v1174
        %v1176 = vmul.f32 %v1170, 1.442695
        %v1177 = vpow.pop %v1176
        %v1178 = vmul.f32 %v1171, 1.442695
        %v1179 = vpow.pop %v1178
        %v1180 = vsel %vm317, %v1173, 0.0
        %v1181 = vrot.slane %v1180, 4
        %v1182 = vadd.f32 %v1180, %v1181
        %v1183 = vrot.slane %v1182, 2
        %v1184 = vadd.f32 %v1182, %v1183
        %v1185 = vrot.slane %v1184, 1
        %v1186 = vadd.f32 %v1184, %v1185
        %v1187 = vsel %vm317, %v1175, 0.0
        %v1188 = vrot.slane %v1187, 4
        %v1189 = vadd.f32 %v1187, %v1188
        %v1190 = vrot.slane %v1189, 2
        %v1191 = vadd.f32 %v1189, %v1190
        %v1192 = vrot.slane %v1191, 1
        %v1193 = vadd.f32 %v1191, %v1192
        %v1194 = vsel %vm317, %v1177, 0.0
        %v1195 = vrot.slane %v1194, 4
        %v1196 = vadd.f32 %v1194, %v1195
        %v1197 = vrot.slane %v1196, 2
        %v1198 = vadd.f32 %v1196, %v1197
        %v1199 = vrot.slane %v1198, 1
        %v1200 = vadd.f32 %v1198, %v1199
        %v1201 = vsel %vm317, %v1179, 0.0
        %v1202 = vrot.slane %v1201, 4
        %v1203 = vadd.f32 %v1201, %v1202
        %v1204 = vrot.slane %v1203, 2
        %v1205 = vadd.f32 %v1203, %v1204
        %v1206 = vrot.slane %v1205, 1
        %v1207 = vadd.f32 %v1205, %v1206
        %v1208 = vrcp.pop %v1186
        %v1209 = vmul.f32 %v1186, %v1208
        %v1210 = vsub.f32 1.0, %v1209
        %v1211 = vmul.f32 %v1208, %v1210
        %v1212 = vadd.f32 %v1208, %v1211
        %vm1213 = vweird.f32 %v1186
        %vm1214 = vweird.f32 %v1208
        %vm1215 = vmor %vm1213, %vm1214
        %v1216 = vsel %vm1215, %v1208, %v1212
        %v1217 = vand.u32 2147483647, %v1186
        %vm1218 = vcmp.eq.f32.partialorder %v1217, 8.507059e+37
        %v1219 = vand.u32 %v1186, 2147483648
        %v1220 = vor.u32 1.1754944e-38, %v1219
        %v1221 = vsel %vm1218, %v1220, %v1216
        %v1222 = vmul.f32 %v1173, %v1221
        %v1223 = vrcp.pop %v1193
        %v1224 = vmul.f32 %v1193, %v1223
        %v1225 = vsub.f32 1.0, %v1224
        %v1226 = vmul.f32 %v1223, %v1225
        %v1227 = vadd.f32 %v1223, %v1226
        %vm1228 = vweird.f32 %v1193
        %vm1229 = vweird.f32 %v1223
        %vm1230 = vmor %vm1228, %vm1229
        %v1231 = vsel %vm1230, %v1223, %v1227
        %v1232 = vand.u32 2147483647, %v1193
        %vm1233 = vcmp.eq.f32.partialorder %v1232, 8.507059e+37
        %v1234 = vand.u32 %v1193, 2147483648
        %v1235 = vor.u32 1.1754944e-38, %v1234
        %v1236 = vsel %vm1233, %v1235, %v1231
        %v1237 = vmul.f32 %v1175, %v1236
        %v1238 = vrcp.pop %v1200
        %v1239 = vmul.f32 %v1200, %v1238
        %v1240 = vsub.f32 1.0, %v1239
        %v1241 = vmul.f32 %v1238, %v1240
        %v1242 = vadd.f32 %v1238, %v1241
        %vm1243 = vweird.f32 %v1200
        %vm1244 = vweird.f32 %v1238
        %vm1245 = vmor %vm1243, %vm1244
        %v1246 = vsel %vm1245, %v1238, %v1242
        %v1247 = vand.u32 2147483647, %v1200
        %vm1248 = vcmp.eq.f32.partialorder %v1247, 8.507059e+37
        %v1249 = vand.u32 %v1200, 2147483648
        %v1250 = vor.u32 1.1754944e-38, %v1249
        %v1251 = vsel %vm1248, %v1250, %v1246
        %v1252 = vmul.f32 %v1177, %v1251
        %v1253 = vrcp.pop %v1207
        %v1254 = vmul.f32 %v1207, %v1253
        %v1255 = vsub.f32 1.0, %v1254
        %v1256 = vmul.f32 %v1253, %v1255
        %v1257 = vadd.f32 %v1253, %v1256
        %vm1258 = vweird.f32 %v1207
        %vm1259 = vweird.f32 %v1253
        %vm1260 = vmor %vm1258, %vm1259
        %v1261 = vsel %vm1260, %v1253, %v1257
        %v1262 = vand.u32 2147483647, %v1207
        %vm1263 = vcmp.eq.f32.partialorder %v1262, 8.507059e+37
        %v1264 = vand.u32 %v1207, 2147483648
        %v1265 = vor.u32 1.1754944e-38, %v1264
        %v1266 = vsel %vm1263, %v1265, %v1261
        %v1267 = vmul.f32 %v1179, %v1266
        %v1268 = vadd.f32 %v324, 1e-08
        %v1269 = vmul.f32 %v1222, %v486
        %v1270 = vmul.f32 %v1237, %v489
        %v1271 = vmul.f32 %v1252, %v492
        %v1272 = vmul.f32 %v1267, %v495
        %v1273 = vsel %vm317, %v1269, 0.0
        %v1274 = vrot.slane %v1273, 4
        %v1275 = vadd.f32 %v1273, %v1274
        %v1276 = vrot.slane %v1275, 2
        %v1277 = vadd.f32 %v1275, %v1276
        %v1278 = vrot.slane %v1277, 1
        %v1279 = vadd.f32 %v1277, %v1278
        %v1280 = vsel %vm317, %v1270, 0.0
        %v1281 = vrot.slane %v1280, 4
        %v1282 = vadd.f32 %v1280, %v1281
        %v1283 = vrot.slane %v1282, 2
        %v1284 = vadd.f32 %v1282, %v1283
        %v1285 = vrot.slane %v1284, 1
        %v1286 = vadd.f32 %v1284, %v1285
        %v1287 = vsel %vm317, %v1271, 0.0
        %v1288 = vrot.slane %v1287, 4
        %v1289 = vadd.f32 %v1287, %v1288
        %v1290 = vrot.slane %v1289, 2
        %v1291 = vadd.f32 %v1289, %v1290
        %v1292 = vrot.slane %v1291, 1
        %v1293 = vadd.f32 %v1291, %v1292
        %v1294 = vsel %vm317, %v1272, 0.0
        %v1295 = vrot.slane %v1294, 4
        %v1296 = vadd.f32 %v1294, %v1295
        %v1297 = vrot.slane %v1296, 2
        %v1298 = vadd.f32 %v1296, %v1297
        %v1299 = vrot.slane %v1298, 1
        %v1300 = vadd.f32 %v1298, %v1299
        %v1301 = vmul.f32 %v1268, %v1279
        %v1302 = vmul.f32 %v1268, %v1286
        %v1303 = vmul.f32 %v1268, %v1293
        %v1304 = vmul.f32 %v1268, %v1300
        %1305 = vmatpush.xpose.msra.mxu0 0.0
        %1306 = vmatpush.xpose.msra.mxu0 0.0
        %1307 = vmatpush.xpose.msra.mxu0 0.0
        %1308 = vmatpush.xpose.msra.mxu0 0.0
        %1309 = vmatpush.xpose.msra.mxu0 0.0
        %1310 = vmatpush.xpose.msra.mxu0 0.0
        %1311 = vmatpush.xpose.msra.mxu0 0.0
        %1312 = vmatpush.xpose.msra.mxu0 0.0
        %1313 = vmatpush.xpose.msra.mxu0 0.0
        %1314 = vmatpush.xpose.msra.mxu0 0.0
        %1315 = vmatpush.xpose.msra.mxu0 0.0
        %1316 = vmatpush.xpose.msra.mxu0 0.0
        %1317 = vmatpush.xpose.msra.mxu0 0.0
        %1318 = vmatpush.xpose.msra.mxu0 0.0
        %1319 = vmatpush.xpose.msra.mxu0 0.0
        %1320 = vmatpush.xpose.msra.mxu0 %v454
        %1321 = vmatmul.f32.gmra.mxu0 %v454
        %v1322 = vpop.f32.mrf.mxu0
        %v1323 = vadd.f32 0.0, %v1322
        %1324 = vdwg.mxu0
        %1325 = vmatpush.xpose.msra.mxu0 0.0
        %1326 = vmatpush.xpose.msra.mxu0 0.0
        %1327 = vmatpush.xpose.msra.mxu0 0.0
        %1328 = vmatpush.xpose.msra.mxu0 0.0
        %1329 = vmatpush.xpose.msra.mxu0 0.0
        %1330 = vmatpush.xpose.msra.mxu0 0.0
        %1331 = vmatpush.xpose.msra.mxu0 0.0
        %1332 = vmatpush.xpose.msra.mxu0 0.0
        %1333 = vmatpush.xpose.msra.mxu0 0.0
        %1334 = vmatpush.xpose.msra.mxu0 0.0
        %1335 = vmatpush.xpose.msra.mxu0 0.0
        %1336 = vmatpush.xpose.msra.mxu0 0.0
        %1337 = vmatpush.xpose.msra.mxu0 0.0
        %1338 = vmatpush.xpose.msra.mxu0 0.0
        %1339 = vmatpush.xpose.msra.mxu0 0.0
        %1340 = vmatpush.xpose.msra.mxu0 %v457
        %1341 = vmatmul.f32.gmra.mxu0 %v457
        %v1342 = vpop.f32.mrf.mxu0
        %v1343 = vadd.f32 0.0, %v1342
        %1344 = vdwg.mxu0
        %1345 = vmatpush.xpose.msra.mxu0 0.0
        %1346 = vmatpush.xpose.msra.mxu0 0.0
        %1347 = vmatpush.xpose.msra.mxu0 0.0
        %1348 = vmatpush.xpose.msra.mxu0 0.0
        %1349 = vmatpush.xpose.msra.mxu0 0.0
        %1350 = vmatpush.xpose.msra.mxu0 0.0
        %1351 = vmatpush.xpose.msra.mxu0 0.0
        %1352 = vmatpush.xpose.msra.mxu0 0.0
        %1353 = vmatpush.xpose.msra.mxu0 0.0
        %1354 = vmatpush.xpose.msra.mxu0 0.0
        %1355 = vmatpush.xpose.msra.mxu0 0.0
        %1356 = vmatpush.xpose.msra.mxu0 0.0
        %1357 = vmatpush.xpose.msra.mxu0 0.0
        %1358 = vmatpush.xpose.msra.mxu0 0.0
        %1359 = vmatpush.xpose.msra.mxu0 0.0
        %1360 = vmatpush.xpose.msra.mxu0 %v460
        %1361 = vmatmul.f32.gmra.mxu0 %v460
        %v1362 = vpop.f32.mrf.mxu0
        %v1363 = vadd.f32 0.0, %v1362
        %1364 = vdwg.mxu0
        %1365 = vmatpush.xpose.msra.mxu0 0.0
        %1366 = vmatpush.xpose.msra.mxu0 0.0
        %1367 = vmatpush.xpose.msra.mxu0 0.0
        %1368 = vmatpush.xpose.msra.mxu0 0.0
        %1369 = vmatpush.xpose.msra.mxu0 0.0
        %1370 = vmatpush.xpose.msra.mxu0 0.0
        %1371 = vmatpush.xpose.msra.mxu0 0.0
        %1372 = vmatpush.xpose.msra.mxu0 0.0
        %1373 = vmatpush.xpose.msra.mxu0 0.0
        %1374 = vmatpush.xpose.msra.mxu0 0.0
        %1375 = vmatpush.xpose.msra.mxu0 0.0
        %1376 = vmatpush.xpose.msra.mxu0 0.0
        %1377 = vmatpush.xpose.msra.mxu0 0.0
        %1378 = vmatpush.xpose.msra.mxu0 0.0
        %1379 = vmatpush.xpose.msra.mxu0 0.0
        %1380 = vmatpush.xpose.msra.mxu0 %v463
        %1381 = vmatmul.f32.gmra.mxu0 %v463
        %v1382 = vpop.f32.mrf.mxu0
        %v1383 = vadd.f32 0.0, %v1382
        %1384 = vdwg.mxu0
        %v1386 = vsel %vm317, %v1323, 0
        %1388 = vmatpush.msra.mxu0 0.0
        %1389 = vmatpush.msra.mxu0 0.0
        %1390 = vmatpush.msra.mxu0 0.0
        %1391 = vmatpush.msra.mxu0 0.0
        %1392 = vmatpush.msra.mxu0 0.0
        %1393 = vmatpush.msra.mxu0 0.0
        %1394 = vmatpush.msra.mxu0 0.0
        %1395 = vmatpush.msra.mxu0 0.0
        %1396 = vmatpush.msra.mxu0 0.0
        %1397 = vmatpush.msra.mxu0 0.0
        %1398 = vmatpush.msra.mxu0 0.0
        %1399 = vmatpush.msra.mxu0 0.0
        %1400 = vmatpush.msra.mxu0 0.0
        %1401 = vmatpush.msra.mxu0 0.0
        %1402 = vmatpush.msra.mxu0 0.0
        %1403 = vmatpush.msra.mxu0 %v1222
        %1404 = vmatmul.f32.gmra.mxu0 %v1386
        %v1405 = vpop.f32.mrf.mxu0
        %v1406 = vadd.f32 0.0, %v1405
        %1407 = vdwg.mxu0
        %v1409 = vsel %vm317, %v1343, 0
        %1411 = vmatpush.msra.mxu0 0.0
        %1412 = vmatpush.msra.mxu0 0.0
        %1413 = vmatpush.msra.mxu0 0.0
        %1414 = vmatpush.msra.mxu0 0.0
        %1415 = vmatpush.msra.mxu0 0.0
        %1416 = vmatpush.msra.mxu0 0.0
        %1417 = vmatpush.msra.mxu0 0.0
        %1418 = vmatpush.msra.mxu0 0.0
        %1419 = vmatpush.msra.mxu0 0.0
        %1420 = vmatpush.msra.mxu0 0.0
        %1421 = vmatpush.msra.mxu0 0.0
        %1422 = vmatpush.msra.mxu0 0.0
        %1423 = vmatpush.msra.mxu0 0.0
        %1424 = vmatpush.msra.mxu0 0.0
        %1425 = vmatpush.msra.mxu0 0.0
        %1426 = vmatpush.msra.mxu0 %v1237
        %1427 = vmatmul.f32.gmra.mxu0 %v1409
        %v1428 = vpop.f32.mrf.mxu0
        %v1429 = vadd.f32 0.0, %v1428
        %1430 = vdwg.mxu0
        %v1432 = vsel %vm317, %v1363, 0
        %1434 = vmatpush.msra.mxu0 0.0
        %1435 = vmatpush.msra.mxu0 0.0
        %1436 = vmatpush.msra.mxu0 0.0
        %1437 = vmatpush.msra.mxu0 0.0
        %1438 = vmatpush.msra.mxu0 0.0
        %1439 = vmatpush.msra.mxu0 0.0
        %1440 = vmatpush.msra.mxu0 0.0
        %1441 = vmatpush.msra.mxu0 0.0
        %1442 = vmatpush.msra.mxu0 0.0
        %1443 = vmatpush.msra.mxu0 0.0
        %1444 = vmatpush.msra.mxu0 0.0
        %1445 = vmatpush.msra.mxu0 0.0
        %1446 = vmatpush.msra.mxu0 0.0
        %1447 = vmatpush.msra.mxu0 0.0
        %1448 = vmatpush.msra.mxu0 0.0
        %1449 = vmatpush.msra.mxu0 %v1252
        %1450 = vmatmul.f32.gmra.mxu0 %v1432
        %v1451 = vpop.f32.mrf.mxu0
        %v1452 = vadd.f32 0.0, %v1451
        %1453 = vdwg.mxu0
        %v1455 = vsel %vm317, %v1383, 0
        %1457 = vmatpush.msra.mxu0 0.0
        %1458 = vmatpush.msra.mxu0 0.0
        %1459 = vmatpush.msra.mxu0 0.0
        %1460 = vmatpush.msra.mxu0 0.0
        %1461 = vmatpush.msra.mxu0 0.0
        %1462 = vmatpush.msra.mxu0 0.0
        %1463 = vmatpush.msra.mxu0 0.0
        %1464 = vmatpush.msra.mxu0 0.0
        %1465 = vmatpush.msra.mxu0 0.0
        %1466 = vmatpush.msra.mxu0 0.0
        %1467 = vmatpush.msra.mxu0 0.0
        %1468 = vmatpush.msra.mxu0 0.0
        %1469 = vmatpush.msra.mxu0 0.0
        %1470 = vmatpush.msra.mxu0 0.0
        %1471 = vmatpush.msra.mxu0 0.0
        %1472 = vmatpush.msra.mxu0 %v1267
        %1473 = vmatmul.f32.gmra.mxu0 %v1455
        %v1474 = vpop.f32.mrf.mxu0
        %v1475 = vadd.f32 0.0, %v1474
        %1476 = vdwg.mxu0
        %v1477 = vmul.f32 %v1222, %v1406
        %v1478 = vmul.f32 %v1237, %v1429
        %v1479 = vmul.f32 %v1252, %v1452
        %v1480 = vmul.f32 %v1267, %v1475
        %v1481 = vsel %vm317, %v1477, 0.0
        %v1482 = vrot.slane %v1481, 4
        %v1483 = vadd.f32 %v1481, %v1482
        %v1484 = vrot.slane %v1483, 2
        %v1485 = vadd.f32 %v1483, %v1484
        %v1486 = vrot.slane %v1485, 1
        %v1487 = vadd.f32 %v1485, %v1486
        %v1488 = vsel %vm317, %v1478, 0.0
        %v1489 = vrot.slane %v1488, 4
        %v1490 = vadd.f32 %v1488, %v1489
        %v1491 = vrot.slane %v1490, 2
        %v1492 = vadd.f32 %v1490, %v1491
        %v1493 = vrot.slane %v1492, 1
        %v1494 = vadd.f32 %v1492, %v1493
        %v1495 = vsel %vm317, %v1479, 0.0
        %v1496 = vrot.slane %v1495, 4
        %v1497 = vadd.f32 %v1495, %v1496
        %v1498 = vrot.slane %v1497, 2
        %v1499 = vadd.f32 %v1497, %v1498
        %v1500 = vrot.slane %v1499, 1
        %v1501 = vadd.f32 %v1499, %v1500
        %v1502 = vsel %vm317, %v1480, 0.0
        %v1503 = vrot.slane %v1502, 4
        %v1504 = vadd.f32 %v1502, %v1503
        %v1505 = vrot.slane %v1504, 2
        %v1506 = vadd.f32 %v1504, %v1505
        %v1507 = vrot.slane %v1506, 1
        %v1508 = vadd.f32 %v1506, %v1507
        %v1509 = vrsqrt.pop %v1487
        %v1510 = vmul.f32 %v1509, %v1487
        %v1511 = vmul.f32 %v1510, %v1509
        %v1512 = vmul.f32 0.5, %v1511
        %v1513 = vsub.f32 1.5, %v1512
        %v1514 = vmul.f32 %v1509, %v1513
        %v1515 = vmul.f32 %v1487, %v1514
        %vm1516 = vcmp.eq.f32.partialorder %v1487, inf
        %v1517 = vsel %vm1516, %v1487, %v1515
        %vm1518 = vcmp.eq.f32.partialorder %v1487, 0.0
        %v1519 = vand.u32 %v1487, 2147483648
        %v1520 = vsel %vm1518, %v1519, %v1517
        %v1521 = vrsqrt.pop %v1494
        %v1522 = vmul.f32 %v1521, %v1494
        %v1523 = vmul.f32 %v1522, %v1521
        %v1524 = vmul.f32 0.5, %v1523
        %v1525 = vsub.f32 1.5, %v1524
        %v1526 = vmul.f32 %v1521, %v1525
        %v1527 = vmul.f32 %v1494, %v1526
        %vm1528 = vcmp.eq.f32.partialorder %v1494, inf
        %v1529 = vsel %vm1528, %v1494, %v1527
        %vm1530 = vcmp.eq.f32.partialorder %v1494, 0.0
        %v1531 = vand.u32 %v1494, 2147483648
        %v1532 = vsel %vm1530, %v1531, %v1529
        %v1533 = vrsqrt.pop %v1501
        %v1534 = vmul.f32 %v1533, %v1501
        %v1535 = vmul.f32 %v1534, %v1533
        %v1536 = vmul.f32 0.5, %v1535
        %v1537 = vsub.f32 1.5, %v1536
        %v1538 = vmul.f32 %v1533, %v1537
        %v1539 = vmul.f32 %v1501, %v1538
        %vm1540 = vcmp.eq.f32.partialorder %v1501, inf
        %v1541 = vsel %vm1540, %v1501, %v1539
        %vm1542 = vcmp.eq.f32.partialorder %v1501, 0.0
        %v1543 = vand.u32 %v1501, 2147483648
        %v1544 = vsel %vm1542, %v1543, %v1541
        %v1545 = vrsqrt.pop %v1508
        %v1546 = vmul.f32 %v1545, %v1508
        %v1547 = vmul.f32 %v1546, %v1545
        %v1548 = vmul.f32 0.5, %v1547
        %v1549 = vsub.f32 1.5, %v1548
        %v1550 = vmul.f32 %v1545, %v1549
        %v1551 = vmul.f32 %v1508, %v1550
        %vm1552 = vcmp.eq.f32.partialorder %v1508, inf
        %v1553 = vsel %vm1552, %v1508, %v1551
        %vm1554 = vcmp.eq.f32.partialorder %v1508, 0.0
        %v1555 = vand.u32 %v1508, 2147483648
        %v1556 = vsel %vm1554, %v1555, %v1553
        %v1557 = vmul.f32 %v324, %v1520
        %v1558 = vmul.f32 %v324, %v1532
        %v1559 = vmul.f32 %v324, %v1544
        %v1560 = vmul.f32 %v324, %v1556
        %v1561 = vmax.f32 %v1557, 1e-08
        %v1562 = vmax.f32 %v1558, 1e-08
        %v1563 = vmax.f32 %v1559, 1e-08
        %v1564 = vmax.f32 %v1560, 1e-08
        %v1565 = vrcp.pop %v1561
        %v1566 = vmul.f32 %v1561, %v1565
        %v1567 = vsub.f32 1.0, %v1566
        %v1568 = vmul.f32 %v1565, %v1567
        %v1569 = vadd.f32 %v1565, %v1568
        %vm1570 = vweird.f32 %v1561
        %vm1571 = vweird.f32 %v1565
        %vm1572 = vmor %vm1570, %vm1571
        %v1573 = vsel %vm1572, %v1565, %v1569
        %v1574 = vand.u32 2147483647, %v1561
        %vm1575 = vcmp.eq.f32.partialorder %v1574, 8.507059e+37
        %v1576 = vand.u32 %v1561, 2147483648
        %v1577 = vor.u32 1.1754944e-38, %v1576
        %v1578 = vsel %vm1575, %v1577, %v1573
        %v1579 = vmul.f32 %v1301, %v1578
        %v1580 = vrcp.pop %v1562
        %v1581 = vmul.f32 %v1562, %v1580
        %v1582 = vsub.f32 1.0, %v1581
        %v1583 = vmul.f32 %v1580, %v1582
        %v1584 = vadd.f32 %v1580, %v1583
        %vm1585 = vweird.f32 %v1562
        %vm1586 = vweird.f32 %v1580
        %vm1587 = vmor %vm1585, %vm1586
        %v1588 = vsel %vm1587, %v1580, %v1584
        %v1589 = vand.u32 2147483647, %v1562
        %vm1590 = vcmp.eq.f32.partialorder %v1589, 8.507059e+37
        %v1591 = vand.u32 %v1562, 2147483648
        %v1592 = vor.u32 1.1754944e-38, %v1591
        %v1593 = vsel %vm1590, %v1592, %v1588
        %v1594 = vmul.f32 %v1302, %v1593
        %v1595 = vrcp.pop %v1563
        %v1596 = vmul.f32 %v1563, %v1595
        %v1597 = vsub.f32 1.0, %v1596
        %v1598 = vmul.f32 %v1595, %v1597
        %v1599 = vadd.f32 %v1595, %v1598
        %vm1600 = vweird.f32 %v1563
        %vm1601 = vweird.f32 %v1595
        %vm1602 = vmor %vm1600, %vm1601
        %v1603 = vsel %vm1602, %v1595, %v1599
        %v1604 = vand.u32 2147483647, %v1563
        %vm1605 = vcmp.eq.f32.partialorder %v1604, 8.507059e+37
        %v1606 = vand.u32 %v1563, 2147483648
        %v1607 = vor.u32 1.1754944e-38, %v1606
        %v1608 = vsel %vm1605, %v1607, %v1603
        %v1609 = vmul.f32 %v1303, %v1608
        %v1610 = vrcp.pop %v1564
        %v1611 = vmul.f32 %v1564, %v1610
        %v1612 = vsub.f32 1.0, %v1611
        %v1613 = vmul.f32 %v1610, %v1612
        %v1614 = vadd.f32 %v1610, %v1613
        %vm1615 = vweird.f32 %v1564
        %vm1616 = vweird.f32 %v1610
        %vm1617 = vmor %vm1615, %vm1616
        %v1618 = vsel %vm1617, %v1610, %v1614
        %v1619 = vand.u32 2147483647, %v1564
        %vm1620 = vcmp.eq.f32.partialorder %v1619, 8.507059e+37
        %v1621 = vand.u32 %v1564, 2147483648
        %v1622 = vor.u32 1.1754944e-38, %v1621
        %v1623 = vsel %vm1620, %v1622, %v1618
        %v1624 = vmul.f32 %v1304, %v1623
        %v1625 = vsel %vm317, %v1579, 0.0
        %1626 = vadd.xlane.f32.xlu0 %v1625
        %v1627 = vpop.xlane.xlu0 %1626
        %v1628 = vsel %vm317, %v1594, 0.0
        %1629 = vadd.xlane.f32.xlu0 %v1628
        %v1630 = vpop.xlane.xlu0 %1629
        %v1631 = vsel %vm317, %v1609, 0.0
        %1632 = vadd.xlane.f32.xlu0 %v1631
        %v1633 = vpop.xlane.xlu0 %1632
        %v1634 = vsel %vm317, %v1624, 0.0
        %1635 = vadd.xlane.f32.xlu0 %v1634
        %v1636 = vpop.xlane.xlu0 %1635
        %v1637 = vmul.f32 %v1627, %v1003
        %v1638 = vmul.f32 %v1630, %v1003
        %v1639 = vmul.f32 %v1633, %v1003
        %v1640 = vmul.f32 %v1636, %v1003
        %v1641 = vadd.f32 %v1004, %v1637
        %v1642 = vadd.f32 %v1005, %v1638
        %v1643 = vadd.f32 %v1006, %v1639
        %v1644 = vadd.f32 %v1007, %v1640
        %vm1649 = vcmask 1041409
        %v1650 = vsel %vm1649, %v1642, %v1641
        %vm1651 = vcmask 1042434
        %v1652 = vsel %vm1651, %v1643, %v1650
        %vm1653 = vcmask 1043459
        %v1654 = vsel %vm1653, %v1644, %v1652
        %v1656 = vsel %vm315, %v1654, 0.0
        %vm1657 = vcmask 27648
        %v1658 = vsel %vm1657, %v1656, 0.0
        %v1659 = vrot.slane %v1658, 4
        %v1660 = vadd.f32 %v1658, %v1659
        %v1661 = vrot.slane %v1660, 2
        %v1662 = vadd.f32 %v1660, %v1661
        %v1663 = vrot.slane %v1662, 1
        %v1664 = vadd.f32 %v1662, %v1663
        %vm1665 = vcmask 24576
        %1666 = vst.msk [vmem:[%s253] sm:$0x1] %vm1665, %v1664
        %s1667 = sand.u32 %s145, 1
        %s1668 = scalar_lea.sflag [#allocation4], %s1667
        %s1669 = sand.u32 %s145, 1
        %s1670 = scalar_lea.vmem [#allocation5], %s1669
        // Predicated region
        $region41: #{tpu_custom_call.1} parent=35 // pred_check
          %p1671 = pneg %p155
        $region42: #{tpu_custom_call.1} parent=35 // pred_check_branch
          %1673 = sbr.rel (%p1671) target = $region44
        $region43: #{tpu_custom_call.1} parent=35 // pred_region
          %1675 = vsyncadd %s1668, 0
          %s1676 = sadd.s32 %s24, %s23
          %s1677 = scalar_lea.hbm %s4, %s1676
          %s1679 = sshll.u32 %s1670, 4
          %s1680 = int_to_ptr.vmem [resolvable:$true] %s1679
          %s1681 = sshll.u32 %s1677, 4
          %s1682 = int_to_ptr.hbm [resolvable:$true] %s1681
          %1684 = dma.vmem_to_hbm [thread:$0]  %s1680, 16, %s1682, %s1668
        $region44: #{tpu_custom_call.1} parent=35 // pred_fallthru
          _
      $region36: #{tpu_custom_call.1} parent=5 // pred_fallthru
        _
      %p1685 = scmp.le.s32.totalorder 2, %s14
      // Predicated region
      $region45: #{tpu_custom_call.1} parent=5 // pred_check
        %p1686 = pneg %p1685
      $region46: #{tpu_custom_call.1} parent=5 // pred_check_branch
        %1688 = sbr.rel (%p1686) target = $region48
      $region47: #{tpu_custom_call.1} parent=5 // pred_region
        %s1689 = ssub.s32 %s14, 2
        // Predicated region
        $region49: #{tpu_custom_call.1} parent=47 // pred_check
          %p1690 = pneg %p161
        $region50: #{tpu_custom_call.1} parent=47 // pred_check_branch
          %1692 = sbr.rel (%p1690) target = $region52
        $region51: #{tpu_custom_call.1} parent=47 // pred_region
          %s1693 = sand.u32 %s146, 1
          %s1694 = scalar_lea.sflag [#allocation4], %s1693
          %s1695 = sand.u32 %s146, 1
          %s1696 = scalar_lea.vmem [#allocation5], %s1695
          %1698 = dma.done %s1694, 16
        $region52: #{tpu_custom_call.1} parent=47 // pred_fallthru
          _
      $region48: #{tpu_custom_call.1} parent=5 // pred_fallthru
        _
    $region6: #{tpu_custom_call.1} parent=1 // loop_footer
      %s18 = sadd.s32 1, %s14
    $region7: #{tpu_custom_call.1} parent=1 // loop_footer_branch
      %13 = sbr.rel target = $region3
    $region8: #{tpu_custom_call.1} parent=1 // loop_exit
      _
    %1699 = vsyncpa [#allocation3], 1
    %s1700 = scalar_lea.sflag [#allocation3], 1
    %1701 = vsyncpa %s1700, 1
    %1702 = vsyncpa [#allocation4], 1
    %s1703 = scalar_lea.sflag [#allocation4], 1
    %1704 = vsyncpa %s1703, 1

</llo_original>
